<compile_context>
chip_gen: v6e
topology: v6e:2x2x1
jax: 0.10.0
libtpu: 0.0.40
codegen_flags: <defaults>
</compile_context>

<pallas_src>
import functools
import numpy as np
import jax
import jax.numpy as jnp
from jax.experimental import pallas as pl
from jax.experimental.pallas import tpu as pltpu

IMAGENET_MEAN = np.array([0.485, 0.456, 0.406], np.float32)
IMAGENET_STD = np.array([0.229, 0.224, 0.225], np.float32)
OUT_HW = 224
ROW_TILE = 112     # output-row tile: 2 tiles per image -> feeds both v7x TCs
CH_PAD = 256       # per-channel lane slab (224 valid + 32 pad), 128-aligned


def _bilinear_resize_matrix(out_size: int, in_size: int) -> np.ndarray:
    """Row-stochastic (out_size, in_size) bilinear interpolation matrix
    (half-pixel centers, edge clamped; matches interpolate(antialias=False))."""
    R = np.zeros((out_size, in_size), np.float32)
    scale = in_size / out_size
    for i in range(out_size):
        src = (i + 0.5) * scale - 0.5
        i0 = int(np.floor(src))
        w = src - i0
        i0c = min(max(i0, 0), in_size - 1)
        i1c = min(max(i0 + 1, 0), in_size - 1)
        R[i, i0c] += 1.0 - w
        R[i, i1c] += w
    return R


# ---------------------------------------------------------------------------
# Kernel 1: resize(224,224) + x/255 + normalize(mean, std), fused.
# Grid step = (one image, one 112-row output tile), all channels batched.
# ---------------------------------------------------------------------------
def _preprocess_kernel(x_ref, rh_ref, rwt_ref, scale_ref, shift_ref, o_ref,
                       *, h_first: bool):
    # x_ref:     (1, C, Hin, Win) uint8   — one full image
    # rh_ref:    (ROW_TILE, Hin)  bf16    — row tile of the H-resize matrix
    # rwt_ref:   (Win, CH_PAD)    bf16    — W-resize matrix^T, zero-padded to 256
    # scale_ref: (1, C*CH_PAD)    f32     — per-channel 1/(255*std), 0 in pad lanes
    # shift_ref: (1, C*CH_PAD)    f32     — per-channel mean/std,    0 in pad lanes
    # o_ref:     (1, ROW_TILE, C*CH_PAD) f32 — lane-dense (768-lane) output slab
    C = x_ref.shape[1]
    rh = rh_ref[...]
    rwt = rwt_ref[...]
    ys = []
    for c in range(C):  # static unroll; cast one channel at a time (small f32 temp)
        xc = x_ref[0, c].astype(jnp.float32).astype(jnp.bfloat16)        # (Hin, Win)
        if h_first:
            u = jnp.dot(rh, xc, preferred_element_type=jnp.float32)      # (ROW, Win)
            y = jnp.dot(u.astype(jnp.bfloat16), rwt,
                        preferred_element_type=jnp.float32)              # (ROW, 256)
        else:
            t = jnp.dot(xc, rwt, preferred_element_type=jnp.float32)     # (Hin, 256)
            y = jnp.dot(rh, t.astype(jnp.bfloat16),
                        preferred_element_type=jnp.float32)              # (ROW, 256)
        ys.append(y)
    # Concatenation at 256-lane offsets: all boundaries are multiples of 128,
    # so no XLU lane rotates; the store below is fully unmasked.
    slab = jnp.concatenate(ys, axis=1)                       # (ROW, C*CH_PAD) f32
    # (y/255 - mean)/std  ==  y * scale - shift   (f32 affine, broadcast over rows)
    o_ref[0] = slab * scale_ref[...] - shift_ref[...]


def preprocess(x: jnp.ndarray) -> jnp.ndarray:
    """x: (N, C, Hin, Win) uint8 raw pixels -> (N, C, 224, 224) float32 normalized."""
    n, c, hin, win = x.shape

    rh = jnp.asarray(_bilinear_resize_matrix(OUT_HW, hin), jnp.bfloat16)   # (224, Hin)
    rwt_np = np.zeros((win, CH_PAD), np.float32)
    rwt_np[:, :OUT_HW] = _bilinear_resize_matrix(OUT_HW, win).T
    rwt = jnp.asarray(rwt_np, jnp.bfloat16)                                # (Win, 256)

    scale_np = np.zeros((1, c * CH_PAD), np.float32)
    shift_np = np.zeros((1, c * CH_PAD), np.float32)
    for ci in range(c):
        scale_np[0, ci * CH_PAD: ci * CH_PAD + OUT_HW] = 1.0 / (255.0 * IMAGENET_STD[ci])
        shift_np[0, ci * CH_PAD: ci * CH_PAD + OUT_HW] = IMAGENET_MEAN[ci] / IMAGENET_STD[ci]
    scale = jnp.asarray(scale_np)
    shift = jnp.asarray(shift_np)

    n_row_tiles = OUT_HW // ROW_TILE
    # Static contraction-order choice: total MXU FLOP proxy over all row tiles.
    cost_h_first = OUT_HW * win * (hin + CH_PAD)
    cost_w_first = n_row_tiles * hin * win * CH_PAD + OUT_HW * hin * CH_PAD
    h_first = cost_h_first <= cost_w_first

    out = pl.pallas_call(
        functools.partial(_preprocess_kernel, h_first=h_first),
        out_shape=jax.ShapeDtypeStruct((n, OUT_HW, c * CH_PAD), jnp.float32),
        grid=(n, n_row_tiles),
        in_specs=[
            pl.BlockSpec((1, c, hin, win), lambda i, r: (i, 0, 0, 0)),  # uint8 image
            pl.BlockSpec((ROW_TILE, hin), lambda i, r: (r, 0)),         # rh row tile
            pl.BlockSpec((win, CH_PAD), lambda i, r: (0, 0)),           # rwt (resident)
            pl.BlockSpec((1, c * CH_PAD), lambda i, r: (0, 0)),         # scale row
            pl.BlockSpec((1, c * CH_PAD), lambda i, r: (0, 0)),         # shift row
        ],
        out_specs=pl.BlockSpec((1, ROW_TILE, c * CH_PAD), lambda i, r: (i, r, 0)),
        compiler_params=pltpu.CompilerParams(
            dimension_semantics=("parallel", "parallel"),
            vmem_limit_bytes=48 * 1024 * 1024),
    )(x, rh, rwt, scale, shift)

    # TODO(synk): for very large source frames (e.g. 2048x2048) also tile Hin into
    # input-row chunks (extra "arbitrary" axis) so the double-buffered uint8 block
    # stays within v7x's 64 MiB VMEM.
    # Layout plumbing only (skip entirely if the consumer can take the slab layout).
    return out.reshape(n, OUT_HW, c, CH_PAD)[..., :OUT_HW].transpose(0, 2, 1, 3)


# ---------------------------------------------------------------------------
# Kernel 2: self.embed — Linear(1536 -> 64, bias=False) on backbone features.
# Weight padded to 128 output lanes and pre-transposed to (K, N) in the wrapper;
# batch tiled with the weight kept resident across steps.
# ---------------------------------------------------------------------------
def _embed_kernel(f_ref, w_ref, o_ref):
    # f_ref: (bb, K) f32, w_ref: (K, Np) f32 — natural (K, N) MXU feed.
    o_ref[...] = jnp.dot(f_ref[...], w_ref[...],
                         preferred_element_type=jnp.float32).astype(o_ref.dtype)


def embed(features: jnp.ndarray, weight: jnp.ndarray, *, block_b: int = 512):
    """features: (B, 1536), weight: (64, 1536) -> (B, 64). Equivalent to f @ W.T."""
    b, d_in = features.shape
    d_out = weight.shape[0]
    d_pad = ((d_out + 127) // 128) * 128                        # lane-dense N (>= 128)
    # One-time wrapper transpose + zero-pad: (K, Np).
    w_p = jnp.zeros((d_in, d_pad), weight.dtype).at[:, :d_out].set(weight.T)
    bb = min(b, block_b)
    out = pl.pallas_call(
        _embed_kernel,
        out_shape=jax.ShapeDtypeStruct((b, d_pad), jnp.float32),
        grid=(pl.cdiv(b, bb),),
        in_specs=[
            pl.BlockSpec((bb, d_in), lambda i: (i, 0)),         # batch tile
            pl.BlockSpec((d_in, d_pad), lambda i: (0, 0)),      # weight stays resident
        ],
        out_specs=pl.BlockSpec((bb, d_pad), lambda i: (i, 0)),
        compiler_params=pltpu.CompilerParams(
            dimension_semantics=("parallel",),
            vmem_limit_bytes=32 * 1024 * 1024),
    )(features, w_p)
    return out[:, :d_out]


# ---------------------------------------------------------------------------
# Forward: resize + normalize (Pallas) -> Swin-L backbone (not translated) ->
#          embed linear (Pallas).
# ---------------------------------------------------------------------------
def forward(x, embed_weight, backbone_features):
    pre = preprocess(x)                            # (N, 3, 224, 224)
    # TODO(synk): the timm Swin-L backbone ('swin_large_patch4_window7_224_in22k')
    # has no clean single-kernel Pallas equivalent and is not translated; the embed
    # kernel is demonstrated on externally supplied (B, 1536) features.
    fea = embed(backbone_features, embed_weight)   # (N, 64)
    return pre, fea


if __name__ == "__main__":
    key = jax.random.PRNGKey(0)
    k_img, k_w, k_feat = jax.random.split(key, 3)

    # Small raw uint8 image batch (values in [0, 255]).
    x = jax.random.randint(k_img, (2, 3, 16, 16), 0, 256, dtype=jnp.int32).astype(jnp.uint8)
    # Deterministic stand-in for state_dict['embed.weight'] (shape (64, 1536)).
    embed_weight = jax.random.normal(k_w, (64, 1536), jnp.float32) * 0.02
    # Deterministic stand-in for the (untranslated) Swin-L features, (B, 1536).
    backbone_features = jax.random.normal(k_feat, (2, 1536), jnp.float32)

    pre, fea = forward(x, embed_weight, backbone_features)
    jax.block_until_ready((pre, fea))
    assert pre.shape == (2, 3, 224, 224) and fea.shape == (2, 64)

    # Numerical sanity checks (loose tolerance: bf16 resize matmuls, f32 accum).
    rh_f = _bilinear_resize_matrix(OUT_HW, 16)
    rw_f = _bilinear_resize_matrix(OUT_HW, 16)
    x_np = np.asarray(x, np.float32)
    ref_pre = np.einsum('oh,nchw,pw->ncop', rh_f, x_np, rw_f)
    ref_pre = (ref_pre / 255.0 - IMAGENET_MEAN[None, :, None, None]) \
        / IMAGENET_STD[None, :, None, None]
    np.testing.assert_allclose(np.asarray(pre), ref_pre, atol=8e-2)

    ref_fea = np.asarray(backbone_features) @ np.asarray(embed_weight).T
    np.testing.assert_allclose(np.asarray(fea), ref_fea, atol=5e-2)

    print("KERNEL_OK")
</pallas_src>

<mosaic_0001>
module attributes {stable_mosaic.version = 11 : i64} {
  func.func @_preprocess_kernel(%arg0: i32, %arg1: i32, %arg2: memref<1x3x16x16xi8, #tpu.memory_space<vmem>>, %arg3: memref<112x16xbf16, #tpu.memory_space<vmem>>, %arg4: memref<16x256xbf16, #tpu.memory_space<vmem>>, %arg5: memref<1x768xf32, #tpu.memory_space<vmem>>, %arg6: memref<1x768xf32, #tpu.memory_space<vmem>>, %arg7: memref<1x112x768xf32, #tpu.memory_space<vmem>>) attributes {dimension_semantics = [#tpu.dimension_semantics<parallel>, #tpu.dimension_semantics<parallel>], iteration_bounds = array<i64: 2, 2>, scalar_prefetch = 0 : i64, scratch_operands = 0 : i64, tpu.core_type = #tpu.core_type<tc>, window_params = [{transform_indices = @transform_0, window_bounds = array<i64: 1, 3, 16, 16>}, {transform_indices = @transform_1, window_bounds = array<i64: 112, 16>}, {pipeline_mode = #tpu.pipeline_mode<synchronous>, transform_indices = @transform_2, window_bounds = array<i64: 16, 256>}, {pipeline_mode = #tpu.pipeline_mode<synchronous>, transform_indices = @transform_3, window_bounds = array<i64: 1, 768>}, {pipeline_mode = #tpu.pipeline_mode<synchronous>, transform_indices = @transform_4, window_bounds = array<i64: 1, 768>}, {transform_indices = @transform_5, window_bounds = array<i64: 1, 112, 768>}]} {
    %c0 = arith.constant 0 : index
    %c0_0 = arith.constant 0 : index
    %0 = vector.load %arg3[%c0, %c0_0] : memref<112x16xbf16, #tpu.memory_space<vmem>>, vector<112x16xbf16>
    %c0_1 = arith.constant 0 : index
    %c0_2 = arith.constant 0 : index
    %1 = vector.load %arg4[%c0_1, %c0_2] : memref<16x256xbf16, #tpu.memory_space<vmem>>, vector<16x256xbf16>
    %c0_3 = arith.constant 0 : index
    %c0_4 = arith.constant 0 : index
    %c0_5 = arith.constant 0 : index
    %c0_6 = arith.constant 0 : index
    %2 = vector.load %arg2[%c0_3, %c0_4, %c0_5, %c0_6] : memref<1x3x16x16xi8, #tpu.memory_space<vmem>>, vector<1x1x16x16xi8>
    %3 = vector.shape_cast %2 : vector<1x1x16x16xi8> to vector<16x16xi8>
    %4 = arith.uitofp %3 : vector<16x16xi8> to vector<16x16xf32>
    %5 = arith.truncf %4 : vector<16x16xf32> to vector<16x16xbf16>
    %cst = arith.constant dense<0.000000e+00> : vector<112x16xf32>
    %6 = tpu.matmul %0, %5, %cst {dimension_numbers = #tpu.dot_dimension_numbers<[1], [0], [0], [1], [0, 0, 1, 1], [], []>} : vector<112x16xbf16>, vector<16x16xbf16>, vector<112x16xf32> -> vector<112x16xf32>
    %7 = arith.truncf %6 : vector<112x16xf32> to vector<112x16xbf16>
    %cst_7 = arith.constant dense<0.000000e+00> : vector<112x256xf32>
    %8 = tpu.matmul %7, %1, %cst_7 {dimension_numbers = #tpu.dot_dimension_numbers<[1], [0], [0], [1], [0, 0, 1, 1], [], []>} : vector<112x16xbf16>, vector<16x256xbf16>, vector<112x256xf32> -> vector<112x256xf32>
    %c0_8 = arith.constant 0 : index
    %c1 = arith.constant 1 : index
    %c0_9 = arith.constant 0 : index
    %c0_10 = arith.constant 0 : index
    %9 = vector.load %arg2[%c0_8, %c1, %c0_9, %c0_10] : memref<1x3x16x16xi8, #tpu.memory_space<vmem>>, vector<1x1x16x16xi8>
    %10 = vector.shape_cast %9 : vector<1x1x16x16xi8> to vector<16x16xi8>
    %11 = arith.uitofp %10 : vector<16x16xi8> to vector<16x16xf32>
    %12 = arith.truncf %11 : vector<16x16xf32> to vector<16x16xbf16>
    %cst_11 = arith.constant dense<0.000000e+00> : vector<112x16xf32>
    %13 = tpu.matmul %0, %12, %cst_11 {dimension_numbers = #tpu.dot_dimension_numbers<[1], [0], [0], [1], [0, 0, 1, 1], [], []>} : vector<112x16xbf16>, vector<16x16xbf16>, vector<112x16xf32> -> vector<112x16xf32>
    %14 = arith.truncf %13 : vector<112x16xf32> to vector<112x16xbf16>
    %cst_12 = arith.constant dense<0.000000e+00> : vector<112x256xf32>
    %15 = tpu.matmul %14, %1, %cst_12 {dimension_numbers = #tpu.dot_dimension_numbers<[1], [0], [0], [1], [0, 0, 1, 1], [], []>} : vector<112x16xbf16>, vector<16x256xbf16>, vector<112x256xf32> -> vector<112x256xf32>
    %c0_13 = arith.constant 0 : index
    %c2 = arith.constant 2 : index
    %c0_14 = arith.constant 0 : index
    %c0_15 = arith.constant 0 : index
    %16 = vector.load %arg2[%c0_13, %c2, %c0_14, %c0_15] : memref<1x3x16x16xi8, #tpu.memory_space<vmem>>, vector<1x1x16x16xi8>
    %17 = vector.shape_cast %16 : vector<1x1x16x16xi8> to vector<16x16xi8>
    %18 = arith.uitofp %17 : vector<16x16xi8> to vector<16x16xf32>
    %19 = arith.truncf %18 : vector<16x16xf32> to vector<16x16xbf16>
    %cst_16 = arith.constant dense<0.000000e+00> : vector<112x16xf32>
    %20 = tpu.matmul %0, %19, %cst_16 {dimension_numbers = #tpu.dot_dimension_numbers<[1], [0], [0], [1], [0, 0, 1, 1], [], []>} : vector<112x16xbf16>, vector<16x16xbf16>, vector<112x16xf32> -> vector<112x16xf32>
    %21 = arith.truncf %20 : vector<112x16xf32> to vector<112x16xbf16>
    %cst_17 = arith.constant dense<0.000000e+00> : vector<112x256xf32>
    %22 = tpu.matmul %21, %1, %cst_17 {dimension_numbers = #tpu.dot_dimension_numbers<[1], [0], [0], [1], [0, 0, 1, 1], [], []>} : vector<112x16xbf16>, vector<16x256xbf16>, vector<112x256xf32> -> vector<112x256xf32>
    %23 = tpu.concatenate %8, %15, %22 in 1 : vector<112x256xf32>, vector<112x256xf32>, vector<112x256xf32> -> vector<112x768xf32>
    %c0_18 = arith.constant 0 : index
    %c0_19 = arith.constant 0 : index
    %24 = vector.load %arg5[%c0_18, %c0_19] : memref<1x768xf32, #tpu.memory_space<vmem>>, vector<1x768xf32>
    %25 = vector.broadcast %24 : vector<1x768xf32> to vector<112x768xf32>
    %26 = arith.mulf %23, %25 : vector<112x768xf32>
    %c0_20 = arith.constant 0 : index
    %c0_21 = arith.constant 0 : index
    %27 = vector.load %arg6[%c0_20, %c0_21] : memref<1x768xf32, #tpu.memory_space<vmem>>, vector<1x768xf32>
    %28 = vector.broadcast %27 : vector<1x768xf32> to vector<112x768xf32>
    %29 = arith.subf %26, %28 : vector<112x768xf32>
    %c0_22 = arith.constant 0 : index
    %c0_23 = arith.constant 0 : index
    %c0_24 = arith.constant 0 : index
    %30 = vector.load %arg7[%c0_22, %c0_23, %c0_24] : memref<1x112x768xf32, #tpu.memory_space<vmem>>, vector<1x112x768xf32>
    %31 = vector.shape_cast %30 : vector<1x112x768xf32> to vector<112x768xf32>
    %32 = vector.shape_cast %29 : vector<112x768xf32> to vector<1x112x768xf32>
    tpu.vector_store %arg7[%c0_22, %c0_23, %c0_24], %32 {strides = array<i32>} : memref<1x112x768xf32, #tpu.memory_space<vmem>>, vector<1x112x768xf32>,
    return
  }
  func.func @transform_0(%arg0: i32, %arg1: i32) -> (i32, i32, i32, i32) {
    %c0_i32 = arith.constant 0 : i32
    %c0_i32_0 = arith.constant 0 : i32
    %c0_i32_1 = arith.constant 0 : i32
    %c0_i32_2 = arith.constant 0 : i32
    return %arg0, %c0_i32, %c0_i32_0, %c0_i32_1 : i32, i32, i32, i32
  }
  func.func @transform_1(%arg0: i32, %arg1: i32) -> (i32, i32) {
    %c0_i32 = arith.constant 0 : i32
    %c0_i32_0 = arith.constant 0 : i32
    return %arg1, %c0_i32 : i32, i32
  }
  func.func @transform_2(%arg0: i32, %arg1: i32) -> (i32, i32) {
    %c0_i32 = arith.constant 0 : i32
    %c0_i32_0 = arith.constant 0 : i32
    %c0_i32_1 = arith.constant 0 : i32
    return %c0_i32, %c0_i32_0 : i32, i32
  }
  func.func @transform_3(%arg0: i32, %arg1: i32) -> (i32, i32) {
    %c0_i32 = arith.constant 0 : i32
    %c0_i32_0 = arith.constant 0 : i32
    %c0_i32_1 = arith.constant 0 : i32
    return %c0_i32, %c0_i32_0 : i32, i32
  }
  func.func @transform_4(%arg0: i32, %arg1: i32) -> (i32, i32) {
    %c0_i32 = arith.constant 0 : i32
    %c0_i32_0 = arith.constant 0 : i32
    %c0_i32_1 = arith.constant 0 : i32
    return %c0_i32, %c0_i32_0 : i32, i32
  }
  func.func @transform_5(%arg0: i32, %arg1: i32) -> (i32, i32, i32) {
    %c0_i32 = arith.constant 0 : i32
    %c0_i32_0 = arith.constant 0 : i32
    return %arg0, %arg1, %c0_i32 : i32, i32, i32
  }
}

</mosaic_0001>

<llo_original>
// kernel: tpu_custom_call.1
$region0: #{tpu_custom_call.1}
  #allocation0 [shape = 'u32[]', space=smem, size = 0x4, offset = 0x4, fixed_abs, tag = 'smem constant byte address 0x4 - core index']
  #allocation1 [shape = 'u32[144,128]{1,0:T(1,128)}', space=vmem, size = 0x12000, scoped, tag = 'internal scratch']
  %s0 = inlined_call_operand.hbm [shape: u8[2,3,16,16], index: 0, kind: input, shape index: {}]
  %s1 = inlined_call_operand.vmem [shape: bf16[224,16], index: 1, kind: input, shape index: {}]
  %s2 = inlined_call_operand.hbm [shape: bf16[16,256], index: 2, kind: input, shape index: {}]
  %s3 = inlined_call_operand.hbm [shape: f32[1,768], index: 3, kind: input, shape index: {}]
  %s4 = inlined_call_operand.hbm [shape: f32[1,768], index: 4, kind: input, shape index: {}]
  %s5 = inlined_call_operand.hbm [shape: f32[2,224,768], index: 5, kind: output, shape index: {}]
  %s6 = sld [smem:[#allocation0]]
  $region69: #{tpu_custom_call.1} parent=0
    _
  %s8 = ssub.s32 1, %s6
  %s9 = scalar_select 0, %s8, %s6
  $region1: #{tpu_custom_call.1} parent=0
    #allocation2 [shape = 'u8[12288]{0}', space=vmem, size = 0x3000, scoped, tag = 'input window, operand 0']
    #allocation3 [shape = 's32[2]{0}', space=sflag, size = 0x8, scoped, tag = 'scoped memory for tpu_custom_call.1']
    #allocation4 [shape = 's32[2]{0}', space=sflag, size = 0x8, scoped, tag = 'scoped memory for tpu_custom_call.1']
    #allocation5 [shape = 'u8[8192]{0}', space=vmem, size = 0x2000, scoped, tag = 'input window, operand 2, single buffered']
    #allocation6 [shape = 's32[1]{0}', space=sflag, size = 0x4, scoped, tag = 'scoped memory for tpu_custom_call.1']
    #allocation7 [shape = 'u8[3072]{0}', space=vmem, size = 0xc00, scoped, tag = 'input window, operand 3, single buffered']
    #allocation8 [shape = 'u8[3072]{0}', space=vmem, size = 0xc00, scoped, tag = 'input window, operand 4, single buffered']
    #allocation9 [shape = 's32[1]{0}', space=sflag, size = 0x4, scoped, tag = 'scoped memory for tpu_custom_call.1']
    #allocation10 [shape = 'u8[688128]{0}', space=vmem, size = 0xa8000, scoped, tag = 'output window, operand 0']
    %10 = vsyncpa [#allocation3], 0
    %s11 = scalar_lea.sflag [#allocation3], 1
    %12 = vsyncpa %s11, 0
    %13 = vsyncpa [#allocation6], 0
    %14 = vsyncpa [#allocation9], 0
    %15 = vsyncpa [#allocation4], 0
    %s16 = scalar_lea.sflag [#allocation4], 1
    %17 = vsyncpa %s16, 0
    loop: start=0, step=1, limit=6
    $region2: #{tpu_custom_call.1} parent=1 // loop_pre_header
      _
    $region3: #{tpu_custom_call.1} parent=1 // loop_header
      %s19 = sphi 0, %s23
      %p20 = scmp.ge.s32.totalorder %s19, 6
      %s26 = sphi 0, %s38
      %s27 = sphi 0, %s34
      %s28 = sphi 0, %s26
      %s29 = sphi 0, %s27
      %s30 = sphi 0, %s28
      %s31 = sphi 0, %s29
      %s41 = sphi 0, %s43
      %s44 = sphi 0, %s41
      %s45 = sphi 0, %s44
      %s61 = sphi 0, %s45
      %s67 = sphi 0, %s69
      %s70 = sphi 0, %s67
      %s71 = sphi 0, %s70
      %s87 = sphi 0, %s71
      %s91 = sphi 0, %s91
      %s93 = sphi 0, %s91
      %s94 = sphi 0, %s93
      %s108 = sphi 0, %s94
      %s112 = sphi 0, %s112
      %s114 = sphi 0, %s112
      %s115 = sphi 0, %s114
      %s129 = sphi 0, %s115
      %s133 = sphi 0, %s133
      %s135 = sphi 0, %s133
      %s136 = sphi 0, %s135
      %s150 = sphi 0, %s136
      %s158 = sphi 0, %s160
      %s161 = sphi 0, %s158
      %s162 = sphi 0, %s161
      %s178 = sphi 0, %s162
    $region4: #{tpu_custom_call.1} parent=1 // loop_header_branch
      %22 = sbr.rel (%p20) target = $region8
    $region5: #{tpu_custom_call.1} parent=1 // loop_body
      %s24 = ssub.s32 %s19, 1
      %s25 = ssub.s32 %s19, 2
      %s32 = sadd.s32 1, %s27
      %p33 = scmp.ge.s32.totalorder %s32, 2
      %s34 = scalar_select %p33, 0, %s32
      %s35 = sadd.s32 1, %s26
      %s36 = scalar_select %p33, %s35, %s26
      %p37 = scmp.ge.s32.totalorder %s36, 2
      %s38 = scalar_select %p37, 0, %s36
      %s39 = ssub.s32 %s26, %s38
      %p40 = scmp.eq.s32.totalorder %s39, 0
      %s42 = sadd.s32 %s41, 1
      %s43 = scalar_select %p40, %s41, %s42
      %p46 = pneg %p40
      %p47 = scmp.eq.s32.totalorder %s19, 3
      %p48 = por %p46, %p47
      %p49 = scmp.ne.s32.totalorder %s41, %s44
      %p50 = scmp.eq.s32.totalorder %s19, 0
      %p51 = por %p49, %p50
      %p52 = scmp.ne.s32.totalorder %s41, %s44
      %p53 = scmp.eq.s32.totalorder %s24, 3
      %p54 = por %p52, %p53
      %p55 = scmp.ne.s32.totalorder %s44, %s45
      %p56 = scmp.eq.s32.totalorder %s24, 0
      %p57 = por %p55, %p56
      %p58 = scmp.ne.s32.totalorder %s44, %s45
      %p59 = scmp.eq.s32.totalorder %s25, 3
      %p60 = por %p58, %p59
      %p62 = scmp.ne.s32.totalorder %s45, %s61
      %p63 = scmp.eq.s32.totalorder %s25, 0
      %p64 = por %p62, %p63
      %s65 = ssub.s32 %s27, %s34
      %p66 = scmp.eq.s32.totalorder %s65, 0
      %s68 = sadd.s32 %s67, 1
      %s69 = scalar_select %p66, %s67, %s68
      %p72 = pneg %p66
      %p73 = scmp.eq.s32.totalorder %s19, 3
      %p74 = por %p72, %p73
      %p75 = scmp.ne.s32.totalorder %s67, %s70
      %p76 = scmp.eq.s32.totalorder %s19, 0
      %p77 = por %p75, %p76
      %p78 = scmp.ne.s32.totalorder %s67, %s70
      %p79 = scmp.eq.s32.totalorder %s24, 3
      %p80 = por %p78, %p79
      %p81 = scmp.ne.s32.totalorder %s70, %s71
      %p82 = scmp.eq.s32.totalorder %s24, 0
      %p83 = por %p81, %p82
      %p84 = scmp.ne.s32.totalorder %s70, %s71
      %p85 = scmp.eq.s32.totalorder %s25, 3
      %p86 = por %p84, %p85
      %p88 = scmp.ne.s32.totalorder %s71, %s87
      %p89 = scmp.eq.s32.totalorder %s25, 0
      %p90 = por %p88, %p89
      %s92 = sadd.s32 %s91, 1
      %p95 = scmp.eq.s32.totalorder %s19, 3
      %p96 = scmp.ne.s32.totalorder %s91, %s93
      %p97 = scmp.eq.s32.totalorder %s19, 0
      %p98 = por %p96, %p97
      %p99 = scmp.ne.s32.totalorder %s91, %s93
      %p100 = scmp.eq.s32.totalorder %s24, 3
      %p101 = por %p99, %p100
      %p102 = scmp.ne.s32.totalorder %s93, %s94
      %p103 = scmp.eq.s32.totalorder %s24, 0
      %p104 = por %p102, %p103
      %p105 = scmp.ne.s32.totalorder %s93, %s94
      %p106 = scmp.eq.s32.totalorder %s25, 3
      %p107 = por %p105, %p106
      %p109 = scmp.ne.s32.totalorder %s94, %s108
      %p110 = scmp.eq.s32.totalorder %s25, 0
      %p111 = por %p109, %p110
      %s113 = sadd.s32 %s112, 1
      %p116 = scmp.eq.s32.totalorder %s19, 3
      %p117 = scmp.ne.s32.totalorder %s112, %s114
      %p118 = scmp.eq.s32.totalorder %s19, 0
      %p119 = por %p117, %p118
      %p120 = scmp.ne.s32.totalorder %s112, %s114
      %p121 = scmp.eq.s32.totalorder %s24, 3
      %p122 = por %p120, %p121
      %p123 = scmp.ne.s32.totalorder %s114, %s115
      %p124 = scmp.eq.s32.totalorder %s24, 0
      %p125 = por %p123, %p124
      %p126 = scmp.ne.s32.totalorder %s114, %s115
      %p127 = scmp.eq.s32.totalorder %s25, 3
      %p128 = por %p126, %p127
      %p130 = scmp.ne.s32.totalorder %s115, %s129
      %p131 = scmp.eq.s32.totalorder %s25, 0
      %p132 = por %p130, %p131
      %s134 = sadd.s32 %s133, 1
      %p137 = scmp.eq.s32.totalorder %s19, 3
      %p138 = scmp.ne.s32.totalorder %s133, %s135
      %p139 = scmp.eq.s32.totalorder %s19, 0
      %p140 = por %p138, %p139
      %p141 = scmp.ne.s32.totalorder %s133, %s135
      %p142 = scmp.eq.s32.totalorder %s24, 3
      %p143 = por %p141, %p142
      %p144 = scmp.ne.s32.totalorder %s135, %s136
      %p145 = scmp.eq.s32.totalorder %s24, 0
      %p146 = por %p144, %p145
      %p147 = scmp.ne.s32.totalorder %s135, %s136
      %p148 = scmp.eq.s32.totalorder %s25, 3
      %p149 = por %p147, %p148
      %p151 = scmp.ne.s32.totalorder %s136, %s150
      %p152 = scmp.eq.s32.totalorder %s25, 0
      %p153 = por %p151, %p152
      %s154 = ssub.s32 %s26, %s38
      %s155 = ssub.s32 %s27, %s34
      %s156 = sor.u32 %s154, %s155
      %p157 = scmp.eq.s32.totalorder %s156, 0
      %s159 = sadd.s32 %s158, 1
      %s160 = scalar_select %p157, %s158, %s159
      %p163 = pneg %p157
      %p164 = scmp.eq.s32.totalorder %s19, 3
      %p165 = por %p163, %p164
      %p166 = scmp.ne.s32.totalorder %s158, %s161
      %p167 = scmp.eq.s32.totalorder %s19, 0
      %p168 = por %p166, %p167
      %p169 = scmp.ne.s32.totalorder %s158, %s161
      %p170 = scmp.eq.s32.totalorder %s24, 3
      %p171 = por %p169, %p170
      %p172 = scmp.ne.s32.totalorder %s161, %s162
      %p173 = scmp.eq.s32.totalorder %s24, 0
      %p174 = por %p172, %p173
      %p175 = scmp.ne.s32.totalorder %s161, %s162
      %p176 = scmp.eq.s32.totalorder %s25, 3
      %p177 = por %p175, %p176
      %p179 = scmp.ne.s32.totalorder %s162, %s178
      %p180 = scmp.eq.s32.totalorder %s25, 0
      %p181 = por %p179, %p180
      %p182 = scmp.le.s32.totalorder 1, %s19
      %p183 = scmp.lt.s32.totalorder %s19, 5
      %p184 = pnand %p182, %p183
      %p185 = pneg %p184
      // Predicated region
      $region9: #{tpu_custom_call.1} parent=5 // pred_check
        _
      $region10: #{tpu_custom_call.1} parent=5 // pred_check_branch
        %187 = sbr.rel (%p184) target = $region12
      $region11: #{tpu_custom_call.1} parent=5 // pred_region
        %s188 = ssub.s32 %s19, 1
        // Predicated region
        $region13: #{tpu_custom_call.1} parent=11 // pred_check
          %p189 = pneg %p104
        $region14: #{tpu_custom_call.1} parent=11 // pred_check_branch
          %191 = sbr.rel (%p189) target = $region16
        $region15: #{tpu_custom_call.1} parent=11 // pred_region
          %s193 = ssub.s32 256, 256
          %194 = vsyncadd [#allocation6], %s193
          %s195 = sshll.u32 [#allocation5], 4
          %s196 = int_to_ptr.vmem [resolvable:$true] %s195
          %201 = dma.hbm_to_vmem [thread:$0]  %s2, 256, %s196, [#allocation6], 128, 128, 8
        $region16: #{tpu_custom_call.1} parent=11 // pred_fallthru
          _
        // Predicated region
        $region17: #{tpu_custom_call.1} parent=11 // pred_check
          %p202 = pneg %p125
        $region18: #{tpu_custom_call.1} parent=11 // pred_check_branch
          %204 = sbr.rel (%p202) target = $region20
        $region19: #{tpu_custom_call.1} parent=11 // pred_region
          %s206 = ssub.s32 96, 96
          %207 = vsyncadd [#allocation6], %s206
          %s209 = sshll.u32 [#allocation7], 4
          %s210 = int_to_ptr.vmem [resolvable:$true] %s209
          %212 = dma.hbm_to_vmem [thread:$0]  %s3, 96, %s210, [#allocation6]
        $region20: #{tpu_custom_call.1} parent=11 // pred_fallthru
          _
        // Predicated region
        $region21: #{tpu_custom_call.1} parent=11 // pred_check
          %p213 = pneg %p146
        $region22: #{tpu_custom_call.1} parent=11 // pred_check_branch
          %215 = sbr.rel (%p213) target = $region24
        $region23: #{tpu_custom_call.1} parent=11 // pred_region
          %s217 = ssub.s32 96, 96
          %218 = vsyncadd [#allocation9], %s217
          %s220 = sshll.u32 [#allocation8], 4
          %s221 = int_to_ptr.vmem [resolvable:$true] %s220
          %223 = dma.hbm_to_vmem [thread:$0]  %s4, 96, %s221, [#allocation9]
        $region24: #{tpu_custom_call.1} parent=11 // pred_fallthru
          _
      $region12: #{tpu_custom_call.1} parent=5 // pred_fallthru
        _
      %p224 = scmp.lt.s32.totalorder %s19, 4
      // Predicated region
      $region25: #{tpu_custom_call.1} parent=5 // pred_check
        %p225 = pneg %p224
      $region26: #{tpu_custom_call.1} parent=5 // pred_check_branch
        %227 = sbr.rel (%p225) target = $region28
      $region27: #{tpu_custom_call.1} parent=5 // pred_region
        // Predicated region
        $region29: #{tpu_custom_call.1} parent=27 // pred_check
          %p228 = pneg %p51
        $region30: #{tpu_custom_call.1} parent=27 // pred_check_branch
          %230 = sbr.rel (%p228) target = $region32
        $region31: #{tpu_custom_call.1} parent=27 // pred_region
          %s231 = sand.u32 %s41, 1
          %s232 = scalar_lea.sflag [#allocation3], %s231
          %s233 = sand.u32 %s41, 1
          %s234 = smul.addr %s233, 12
          %s235 = scalar_lea.vmem [#allocation2], %s234
          %s237 = ssub.s32 192, 192
          %238 = vsyncadd %s232, %s237
          %s239 = smul.addr %s26, 6
          %s240 = smul.addr %s239, 32
          %s241 = scalar_lea.hbm %s0, %s240
          %s242 = sshll.u32 %s235, 4
          %s243 = int_to_ptr.vmem [resolvable:$true] %s242
          %248 = dma.hbm_to_vmem [thread:$0]  %s241, 192, %s243, %s232, 32, 32, 2
        $region32: #{tpu_custom_call.1} parent=27 // pred_fallthru
          _
        // Predicated region
        $region33: #{tpu_custom_call.1} parent=27 // pred_check
          %p249 = pneg %p77
        $region34: #{tpu_custom_call.1} parent=27 // pred_check_branch
          %251 = sbr.rel (%p249) target = $region36
        $region35: #{tpu_custom_call.1} parent=27 // pred_region
          %s252 = smul.u32 14, %s27
          %p253 = scmp.lt.s32.totalorder %s252, 27
          %s254 = scalar_select %p253, %s252, 27
          %s255 = smul.addr %s254, 4
          %s256 = scalar_lea.vmem %s1, %s255
          %s257 = smul.u32 14, %s27
        $region36: #{tpu_custom_call.1} parent=27 // pred_fallthru
          _
      $region28: #{tpu_custom_call.1} parent=5 // pred_fallthru
        _
      %p258 = scmp.le.s32.totalorder 1, %s19
      %p259 = scmp.lt.s32.totalorder %s19, 5
      %p260 = pnand %p258, %p259
      %p261 = pneg %p260
      // Predicated region
      $region37: #{tpu_custom_call.1} parent=5 // pred_check
        _
      $region38: #{tpu_custom_call.1} parent=5 // pred_check_branch
        %263 = sbr.rel (%p260) target = $region40
      $region39: #{tpu_custom_call.1} parent=5 // pred_region
        %s264 = ssub.s32 %s19, 1
        %s265 = sand.u32 %s44, 1
        %s266 = scalar_lea.sflag [#allocation3], %s265
        %s267 = sand.u32 %s44, 1
        %s268 = smul.addr %s267, 12
        %s269 = scalar_lea.vmem [#allocation2], %s268
        // Predicated region
        $region41: #{tpu_custom_call.1} parent=39 // pred_check
          %p270 = pneg %p57
        $region42: #{tpu_custom_call.1} parent=39 // pred_check_branch
          %272 = sbr.rel (%p270) target = $region44
        $region43: #{tpu_custom_call.1} parent=39 // pred_region
          %273 = dma.done %s266, 192
        $region44: #{tpu_custom_call.1} parent=39 // pred_fallthru
          _
        // Predicated region
        $region45: #{tpu_custom_call.1} parent=39 // pred_check
          %p274 = pneg %p104
        $region46: #{tpu_custom_call.1} parent=39 // pred_check_branch
          %276 = sbr.rel (%p274) target = $region48
        $region47: #{tpu_custom_call.1} parent=39 // pred_region
          %277 = dma.done [#allocation6], 256
        $region48: #{tpu_custom_call.1} parent=39 // pred_fallthru
          _
        // Predicated region
        $region49: #{tpu_custom_call.1} parent=39 // pred_check
          %p278 = pneg %p125
        $region50: #{tpu_custom_call.1} parent=39 // pred_check_branch
          %280 = sbr.rel (%p278) target = $region52
        $region51: #{tpu_custom_call.1} parent=39 // pred_region
          %281 = dma.done [#allocation6], 96
        $region52: #{tpu_custom_call.1} parent=39 // pred_fallthru
          _
        // Predicated region
        $region53: #{tpu_custom_call.1} parent=39 // pred_check
          %p282 = pneg %p146
        $region54: #{tpu_custom_call.1} parent=39 // pred_check_branch
          %284 = sbr.rel (%p282) target = $region56
        $region55: #{tpu_custom_call.1} parent=39 // pred_region
          %285 = dma.done [#allocation9], 96
        $region56: #{tpu_custom_call.1} parent=39 // pred_fallthru
          _
        %s286 = sand.u32 %s44, 1
        %s287 = scalar_lea.sflag [#allocation3], %s286
        %s288 = sand.u32 %s44, 1
        %s289 = smul.addr %s288, 12
        %s290 = scalar_lea.vmem [#allocation2], %s289
        %p291 = pneg %p57
        %p292 = pneg %p54
        %s293 = smul.u32 14, %s29
        %p294 = scmp.lt.s32.totalorder %s293, 27
        %s295 = scalar_select %p294, %s293, 27
        %s296 = smul.addr %s295, 4
        %s297 = scalar_lea.vmem %s1, %s296
        %p298 = pneg %p83
        %p299 = pneg %p80
        %p300 = pneg %p104
        %p301 = pneg %p101
        %p302 = pneg %p125
        %p303 = pneg %p122
        %p304 = pneg %p146
        %p305 = pneg %p143
        %p306 = pneg %p174
        %p307 = pneg %p171
        %s308 = sand.u32 %s161, 1
        %s309 = scalar_lea.sflag [#allocation4], %s308
        %s310 = sand.u32 %s161, 1
        %s311 = smul.addr %s310, 672
        %s312 = scalar_lea.vmem [#allocation10], %s311
        %s313 = smul.u32 14, %s29
        %p314 = scmp.lt.s32.totalorder %s313, 27
        %s315 = scalar_select %p314, %s313, 27
        %s316 = smul.addr %s315, 4
        %s317 = scalar_lea.vmem %s1, %s316
        %s318 = smul.u32 14, %s29
        %s319 = smul.u32 14, %s29
        %v321 = vld [vmem:[%s317] sm:$0xf]
        %v322 = vld [vmem:[%s317 + $0x4] sm:$0xf]
        %v323 = vld [vmem:[%s317 + $0x8] sm:$0xf]
        %v324 = vld [vmem:[%s317 + $0xc] sm:$0xf]
        %v325 = vld [vmem:[%s317 + $0x10] sm:$0xf]
        %v326 = vld [vmem:[%s317 + $0x14] sm:$0xf]
        %v327 = vld [vmem:[%s317 + $0x18] sm:$0xf]
        %v328 = vld [vmem:[%s317 + $0x1c] sm:$0xf]
        %v329 = vld [vmem:[%s317 + $0x20] sm:$0xf]
        %v330 = vld [vmem:[%s317 + $0x24] sm:$0xf]
        %v331 = vld [vmem:[%s317 + $0x28] sm:$0xf]
        %v332 = vld [vmem:[%s317 + $0x2c] sm:$0xf]
        %v333 = vld [vmem:[%s317 + $0x30] sm:$0xf]
        %v334 = vld [vmem:[%s317 + $0x34] sm:$0xf]
        %v335 = vld [vmem:[#allocation5] sm:$0xff]
        %v336 = vld [vmem:[#allocation5 + $0x8] sm:$0xff]
        %v337 = vld [vmem:[%s269] sm:$0x3]
        %v338 = vld [vmem:[%s269 + $0x2] sm:$0x3]
        %v339 = vunpack.c.l.u8.bf16 %v337
        %v340 = vunpack.c.l.u8.bf16 %v338
        %v355 = vunpack.c.l.b16 %v321
        %v356 = vunpack.c.l.b16 %v322
        %v357 = vunpack.c.l.b16 %v323
        %v358 = vunpack.c.l.b16 %v324
        %v359 = vunpack.c.l.b16 %v325
        %v360 = vunpack.c.l.b16 %v326
        %v361 = vunpack.c.l.b16 %v327
        %v362 = vunpack.c.l.b16 %v328
        %v363 = vunpack.c.l.b16 %v329
        %v364 = vunpack.c.l.b16 %v330
        %v365 = vunpack.c.l.b16 %v331
        %v366 = vunpack.c.l.b16 %v332
        %v367 = vunpack.c.l.b16 %v333
        %v368 = vunpack.c.l.b16 %v334
        %v369 = vpack.c.b16 %v356, %v355
        %v370 = vpack.c.b16 %v358, %v357
        %v371 = vpack.c.b16 %v360, %v359
        %v372 = vpack.c.b16 %v362, %v361
        %v373 = vpack.c.b16 %v364, %v363
        %v374 = vpack.c.b16 %v366, %v365
        %v375 = vpack.c.b16 %v368, %v367
        %v378 = vunpack.c.l.b16 %v339
        %v379 = vunpack.c.l.b16 %v340
        %v380 = vpack.c.b16 %v379, %v378
        %vm382 = vcmask 130048
        %v384 = vsel %vm382, %v369, 0
        %v387 = vsel %vm382, %v370, 0
        %v390 = vsel %vm382, %v371, 0
        %v393 = vsel %vm382, %v372, 0
        %v396 = vsel %vm382, %v373, 0
        %v399 = vsel %vm382, %v374, 0
        %v402 = vsel %vm382, %v375, 0
        %404 = vmatprep.subr.bf16.mxu0 0
        %405 = vmatpush1.bf16.msra.mxu0 0
        %406 = vmatprep.subr.bf16.mxu0 0
        %407 = vmatpush1.bf16.msra.mxu0 0
        %408 = vmatprep.subr.bf16.mxu0 0
        %409 = vmatpush1.bf16.msra.mxu0 0
        %410 = vmatprep.subr.bf16.mxu0 0
        %411 = vmatpush1.bf16.msra.mxu0 0
        %412 = vmatprep.subr.bf16.mxu0 0
        %413 = vmatpush1.bf16.msra.mxu0 0
        %414 = vmatprep.subr.bf16.mxu0 0
        %415 = vmatpush1.bf16.msra.mxu0 0
        %416 = vmatprep.subr.bf16.mxu0 0
        %417 = vmatpush1.bf16.msra.mxu0 0
        %418 = vmatprep.subr.bf16.mxu0 0
        %419 = vmatpush1.bf16.msra.mxu0 %v380
        %420 = vmatprep.subr.bf16.mxu0 0
        %421 = vmatpush2.bf16.msra.mxu0 0
        %422 = vmatprep.subr.bf16.mxu0 0
        %423 = vmatpush2.bf16.msra.mxu0 0
        %424 = vmatprep.subr.bf16.mxu0 0
        %425 = vmatpush2.bf16.msra.mxu0 0
        %426 = vmatprep.subr.bf16.mxu0 0
        %427 = vmatpush2.bf16.msra.mxu0 0
        %428 = vmatprep.subr.bf16.mxu0 0
        %429 = vmatpush2.bf16.msra.mxu0 0
        %430 = vmatprep.subr.bf16.mxu0 0
        %431 = vmatpush2.bf16.msra.mxu0 0
        %432 = vmatprep.subr.bf16.mxu0 0
        %433 = vmatpush2.bf16.msra.mxu0 0
        %434 = vmatprep.subr.bf16.mxu0 0
        %435 = vmatpush2.bf16.msra.mxu0 0
        %436 = vmatprep.mubr.bf16.mxu0 0
        %437 = vmatmul.mubr.bf16.gmra.mxu0 %v384
        %v438 = vpop.f32.mrf.mxu0
        %v439 = vadd.f32 0.0, %v438
        %v440 = vpop.f32.mrf.mxu0
        %v441 = vpop.f32.mrf.mxu0
        %v442 = vadd.f32 0.0, %v441
        %v443 = vpop.f32.mrf.mxu0
        %444 = vmatprep.mubr.bf16.mxu0 0
        %445 = vmatmul.mubr.bf16.gmra.mxu0 %v387
        %v446 = vpop.f32.mrf.mxu0
        %v447 = vadd.f32 0.0, %v446
        %v448 = vpop.f32.mrf.mxu0
        %v449 = vpop.f32.mrf.mxu0
        %v450 = vadd.f32 0.0, %v449
        %v451 = vpop.f32.mrf.mxu0
        %452 = vmatprep.mubr.bf16.mxu0 0
        %453 = vmatmul.mubr.bf16.gmra.mxu0 %v390
        %v454 = vpop.f32.mrf.mxu0
        %v455 = vadd.f32 0.0, %v454
        %v456 = vpop.f32.mrf.mxu0
        %v457 = vpop.f32.mrf.mxu0
        %v458 = vadd.f32 0.0, %v457
        %v459 = vpop.f32.mrf.mxu0
        %460 = vmatprep.mubr.bf16.mxu0 0
        %461 = vmatmul.mubr.bf16.gmra.mxu0 %v393
        %v462 = vpop.f32.mrf.mxu0
        %v463 = vadd.f32 0.0, %v462
        %v464 = vpop.f32.mrf.mxu0
        %v465 = vpop.f32.mrf.mxu0
        %v466 = vadd.f32 0.0, %v465
        %v467 = vpop.f32.mrf.mxu0
        %468 = vmatprep.mubr.bf16.mxu0 0
        %469 = vmatmul.mubr.bf16.gmra.mxu0 %v396
        %v470 = vpop.f32.mrf.mxu0
        %v471 = vadd.f32 0.0, %v470
        %v472 = vpop.f32.mrf.mxu0
        %v473 = vpop.f32.mrf.mxu0
        %v474 = vadd.f32 0.0, %v473
        %v475 = vpop.f32.mrf.mxu0
        %476 = vmatprep.mubr.bf16.mxu0 0
        %477 = vmatmul.mubr.bf16.gmra.mxu0 %v399
        %v478 = vpop.f32.mrf.mxu0
        %v479 = vadd.f32 0.0, %v478
        %v480 = vpop.f32.mrf.mxu0
        %v481 = vpop.f32.mrf.mxu0
        %v482 = vadd.f32 0.0, %v481
        %v483 = vpop.f32.mrf.mxu0
        %484 = vmatprep.mubr.bf16.mxu0 0
        %485 = vmatmul.mubr.bf16.gmra.mxu0 %v402
        %v486 = vpop.f32.mrf.mxu0
        %v487 = vadd.f32 0.0, %v486
        %v488 = vpop.f32.mrf.mxu0
        %v489 = vpop.f32.mrf.mxu0
        %v490 = vadd.f32 0.0, %v489
        %v491 = vpop.f32.mrf.mxu0
        %492 = vdwg.mxu0
        %v493 = vpack.c.bf16 %v442, %v439
        %v494 = vpack.c.bf16 %v450, %v447
        %v495 = vpack.c.bf16 %v458, %v455
        %v496 = vpack.c.bf16 %v466, %v463
        %v497 = vpack.c.bf16 %v474, %v471
        %v498 = vpack.c.bf16 %v482, %v479
        %v499 = vpack.c.bf16 %v490, %v487
        %v502 = vunpack.c.l.b16 %v335
        %v503 = vunpack.c.h.b16 %v335
        %v504 = vunpack.c.l.b16 %v336
        %v505 = vunpack.c.h.b16 %v336
        %v506 = vpack.c.b16 %v504, %v502
        %v507 = vpack.c.b16 %v505, %v503
        %v511 = vsel %vm382, %v493, 0
        %v514 = vsel %vm382, %v494, 0
        %v517 = vsel %vm382, %v495, 0
        %v520 = vsel %vm382, %v496, 0
        %v523 = vsel %vm382, %v497, 0
        %v526 = vsel %vm382, %v498, 0
        %v529 = vsel %vm382, %v499, 0
        %531 = vmatprep.subr.bf16.mxu0 0
        %532 = vmatpush1.bf16.msra.mxu0 0
        %533 = vmatprep.subr.bf16.mxu0 0
        %534 = vmatpush1.bf16.msra.mxu0 0
        %535 = vmatprep.subr.bf16.mxu0 0
        %536 = vmatpush1.bf16.msra.mxu0 0
        %537 = vmatprep.subr.bf16.mxu0 0
        %538 = vmatpush1.bf16.msra.mxu0 0
        %539 = vmatprep.subr.bf16.mxu0 0
        %540 = vmatpush1.bf16.msra.mxu0 0
        %541 = vmatprep.subr.bf16.mxu0 0
        %542 = vmatpush1.bf16.msra.mxu0 0
        %543 = vmatprep.subr.bf16.mxu0 0
        %544 = vmatpush1.bf16.msra.mxu0 0
        %545 = vmatprep.subr.bf16.mxu0 %v507
        %546 = vmatpush1.bf16.msra.mxu0 %v506
        %547 = vmatprep.subr.bf16.mxu0 0
        %548 = vmatpush2.bf16.msra.mxu0 0
        %549 = vmatprep.subr.bf16.mxu0 0
        %550 = vmatpush2.bf16.msra.mxu0 0
        %551 = vmatprep.subr.bf16.mxu0 0
        %552 = vmatpush2.bf16.msra.mxu0 0
        %553 = vmatprep.subr.bf16.mxu0 0
        %554 = vmatpush2.bf16.msra.mxu0 0
        %555 = vmatprep.subr.bf16.mxu0 0
        %556 = vmatpush2.bf16.msra.mxu0 0
        %557 = vmatprep.subr.bf16.mxu0 0
        %558 = vmatpush2.bf16.msra.mxu0 0
        %559 = vmatprep.subr.bf16.mxu0 0
        %560 = vmatpush2.bf16.msra.mxu0 0
        %561 = vmatprep.subr.bf16.mxu0 0
        %562 = vmatpush2.bf16.msra.mxu0 0
        %563 = vmatprep.mubr.bf16.mxu0 0
        %564 = vmatmul.mubr.bf16.gmra.mxu0 %v511
        %v565 = vpop.f32.mrf.mxu0
        %v566 = vadd.f32 0.0, %v565
        %v567 = vpop.f32.mrf.mxu0
        %v568 = vadd.f32 0.0, %v567
        %v569 = vpop.f32.mrf.mxu0
        %v570 = vadd.f32 0.0, %v569
        %v571 = vpop.f32.mrf.mxu0
        %v572 = vadd.f32 0.0, %v571
        %573 = vmatprep.mubr.bf16.mxu0 0
        %574 = vmatmul.mubr.bf16.gmra.mxu0 %v514
        %v575 = vpop.f32.mrf.mxu0
        %v576 = vadd.f32 0.0, %v575
        %v577 = vpop.f32.mrf.mxu0
        %v578 = vadd.f32 0.0, %v577
        %v579 = vpop.f32.mrf.mxu0
        %v580 = vadd.f32 0.0, %v579
        %v581 = vpop.f32.mrf.mxu0
        %v582 = vadd.f32 0.0, %v581
        %583 = vmatprep.mubr.bf16.mxu0 0
        %584 = vmatmul.mubr.bf16.gmra.mxu0 %v517
        %v585 = vpop.f32.mrf.mxu0
        %v586 = vadd.f32 0.0, %v585
        %v587 = vpop.f32.mrf.mxu0
        %v588 = vadd.f32 0.0, %v587
        %v589 = vpop.f32.mrf.mxu0
        %v590 = vadd.f32 0.0, %v589
        %v591 = vpop.f32.mrf.mxu0
        %v592 = vadd.f32 0.0, %v591
        %593 = vmatprep.mubr.bf16.mxu0 0
        %594 = vmatmul.mubr.bf16.gmra.mxu0 %v520
        %v595 = vpop.f32.mrf.mxu0
        %v596 = vadd.f32 0.0, %v595
        %v597 = vpop.f32.mrf.mxu0
        %v598 = vadd.f32 0.0, %v597
        %v599 = vpop.f32.mrf.mxu0
        %v600 = vadd.f32 0.0, %v599
        %v601 = vpop.f32.mrf.mxu0
        %v602 = vadd.f32 0.0, %v601
        %603 = vmatprep.mubr.bf16.mxu0 0
        %604 = vmatmul.mubr.bf16.gmra.mxu0 %v523
        %v605 = vpop.f32.mrf.mxu0
        %v606 = vadd.f32 0.0, %v605
        %v607 = vpop.f32.mrf.mxu0
        %v608 = vadd.f32 0.0, %v607
        %v609 = vpop.f32.mrf.mxu0
        %v610 = vadd.f32 0.0, %v609
        %v611 = vpop.f32.mrf.mxu0
        %v612 = vadd.f32 0.0, %v611
        %613 = vmatprep.mubr.bf16.mxu0 0
        %614 = vmatmul.mubr.bf16.gmra.mxu0 %v526
        %v615 = vpop.f32.mrf.mxu0
        %v616 = vadd.f32 0.0, %v615
        %v617 = vpop.f32.mrf.mxu0
        %v618 = vadd.f32 0.0, %v617
        %v619 = vpop.f32.mrf.mxu0
        %v620 = vadd.f32 0.0, %v619
        %v621 = vpop.f32.mrf.mxu0
        %v622 = vadd.f32 0.0, %v621
        %623 = vmatprep.mubr.bf16.mxu0 0
        %624 = vmatmul.mubr.bf16.gmra.mxu0 %v529
        %v625 = vpop.f32.mrf.mxu0
        %v626 = vadd.f32 0.0, %v625
        %v627 = vpop.f32.mrf.mxu0
        %v628 = vadd.f32 0.0, %v627
        %v629 = vpop.f32.mrf.mxu0
        %v630 = vadd.f32 0.0, %v629
        %v631 = vpop.f32.mrf.mxu0
        %v632 = vadd.f32 0.0, %v631
        %633 = vdwg.mxu0
        %s634 = scalar_lea.vmem %s269, 4 [#allocation2]
        %v635 = vld [vmem:[%s634] sm:$0x3]
        %v636 = vld [vmem:[%s634 + $0x2] sm:$0x3]
        %v637 = vunpack.c.l.u8.bf16 %v635
        %v638 = vunpack.c.l.u8.bf16 %v636
        %v641 = vunpack.c.l.b16 %v637
        %v642 = vunpack.c.l.b16 %v638
        %v643 = vpack.c.b16 %v642, %v641
        %645 = vmatprep.subr.bf16.mxu0 0
        %646 = vmatpush1.bf16.msra.mxu0 0
        %647 = vmatprep.subr.bf16.mxu0 0
        %648 = vmatpush1.bf16.msra.mxu0 0
        %649 = vmatprep.subr.bf16.mxu0 0
        %650 = vmatpush1.bf16.msra.mxu0 0
        %651 = vmatprep.subr.bf16.mxu0 0
        %652 = vmatpush1.bf16.msra.mxu0 0
        %653 = vmatprep.subr.bf16.mxu0 0
        %654 = vmatpush1.bf16.msra.mxu0 0
        %655 = vmatprep.subr.bf16.mxu0 0
        %656 = vmatpush1.bf16.msra.mxu0 0
        %657 = vmatprep.subr.bf16.mxu0 0
        %658 = vmatpush1.bf16.msra.mxu0 0
        %659 = vmatprep.subr.bf16.mxu0 0
        %660 = vmatpush1.bf16.msra.mxu0 %v643
        %661 = vmatprep.subr.bf16.mxu0 0
        %662 = vmatpush2.bf16.msra.mxu0 0
        %663 = vmatprep.subr.bf16.mxu0 0
        %664 = vmatpush2.bf16.msra.mxu0 0
        %665 = vmatprep.subr.bf16.mxu0 0
        %666 = vmatpush2.bf16.msra.mxu0 0
        %667 = vmatprep.subr.bf16.mxu0 0
        %668 = vmatpush2.bf16.msra.mxu0 0
        %669 = vmatprep.subr.bf16.mxu0 0
        %670 = vmatpush2.bf16.msra.mxu0 0
        %671 = vmatprep.subr.bf16.mxu0 0
        %672 = vmatpush2.bf16.msra.mxu0 0
        %673 = vmatprep.subr.bf16.mxu0 0
        %674 = vmatpush2.bf16.msra.mxu0 0
        %675 = vmatprep.subr.bf16.mxu0 0
        %676 = vmatpush2.bf16.msra.mxu0 0
        %677 = vmatprep.mubr.bf16.mxu0 0
        %678 = vmatmul.mubr.bf16.gmra.mxu0 %v384
        %v679 = vpop.f32.mrf.mxu0
        %v680 = vadd.f32 0.0, %v679
        %v681 = vpop.f32.mrf.mxu0
        %v682 = vpop.f32.mrf.mxu0
        %v683 = vadd.f32 0.0, %v682
        %v684 = vpop.f32.mrf.mxu0
        %685 = vmatprep.mubr.bf16.mxu0 0
        %686 = vmatmul.mubr.bf16.gmra.mxu0 %v387
        %v687 = vpop.f32.mrf.mxu0
        %v688 = vadd.f32 0.0, %v687
        %v689 = vpop.f32.mrf.mxu0
        %v690 = vpop.f32.mrf.mxu0
        %v691 = vadd.f32 0.0, %v690
        %v692 = vpop.f32.mrf.mxu0
        %693 = vmatprep.mubr.bf16.mxu0 0
        %694 = vmatmul.mubr.bf16.gmra.mxu0 %v390
        %v695 = vpop.f32.mrf.mxu0
        %v696 = vadd.f32 0.0, %v695
        %v697 = vpop.f32.mrf.mxu0
        %v698 = vpop.f32.mrf.mxu0
        %v699 = vadd.f32 0.0, %v698
        %v700 = vpop.f32.mrf.mxu0
        %701 = vmatprep.mubr.bf16.mxu0 0
        %702 = vmatmul.mubr.bf16.gmra.mxu0 %v393
        %v703 = vpop.f32.mrf.mxu0
        %v704 = vadd.f32 0.0, %v703
        %v705 = vpop.f32.mrf.mxu0
        %v706 = vpop.f32.mrf.mxu0
        %v707 = vadd.f32 0.0, %v706
        %v708 = vpop.f32.mrf.mxu0
        %709 = vmatprep.mubr.bf16.mxu0 0
        %710 = vmatmul.mubr.bf16.gmra.mxu0 %v396
        %v711 = vpop.f32.mrf.mxu0
        %v712 = vadd.f32 0.0, %v711
        %v713 = vpop.f32.mrf.mxu0
        %v714 = vpop.f32.mrf.mxu0
        %v715 = vadd.f32 0.0, %v714
        %v716 = vpop.f32.mrf.mxu0
        %717 = vmatprep.mubr.bf16.mxu0 0
        %718 = vmatmul.mubr.bf16.gmra.mxu0 %v399
        %v719 = vpop.f32.mrf.mxu0
        %v720 = vadd.f32 0.0, %v719
        %v721 = vpop.f32.mrf.mxu0
        %v722 = vpop.f32.mrf.mxu0
        %v723 = vadd.f32 0.0, %v722
        %v724 = vpop.f32.mrf.mxu0
        %725 = vmatprep.mubr.bf16.mxu0 0
        %726 = vmatmul.mubr.bf16.gmra.mxu0 %v402
        %v727 = vpop.f32.mrf.mxu0
        %v728 = vadd.f32 0.0, %v727
        %v729 = vpop.f32.mrf.mxu0
        %v730 = vpop.f32.mrf.mxu0
        %v731 = vadd.f32 0.0, %v730
        %v732 = vpop.f32.mrf.mxu0
        %733 = vdwg.mxu0
        %v734 = vpack.c.bf16 %v683, %v680
        %v735 = vpack.c.bf16 %v691, %v688
        %v736 = vpack.c.bf16 %v699, %v696
        %v737 = vpack.c.bf16 %v707, %v704
        %v738 = vpack.c.bf16 %v715, %v712
        %v739 = vpack.c.bf16 %v723, %v720
        %v740 = vpack.c.bf16 %v731, %v728
        %v742 = vsel %vm382, %v734, 0
        %v745 = vsel %vm382, %v735, 0
        %v748 = vsel %vm382, %v736, 0
        %v751 = vsel %vm382, %v737, 0
        %v754 = vsel %vm382, %v738, 0
        %v757 = vsel %vm382, %v739, 0
        %v760 = vsel %vm382, %v740, 0
        %762 = vmatprep.subr.bf16.mxu0 0
        %763 = vmatpush1.bf16.msra.mxu0 0
        %764 = vmatprep.subr.bf16.mxu0 0
        %765 = vmatpush1.bf16.msra.mxu0 0
        %766 = vmatprep.subr.bf16.mxu0 0
        %767 = vmatpush1.bf16.msra.mxu0 0
        %768 = vmatprep.subr.bf16.mxu0 0
        %769 = vmatpush1.bf16.msra.mxu0 0
        %770 = vmatprep.subr.bf16.mxu0 0
        %771 = vmatpush1.bf16.msra.mxu0 0
        %772 = vmatprep.subr.bf16.mxu0 0
        %773 = vmatpush1.bf16.msra.mxu0 0
        %774 = vmatprep.subr.bf16.mxu0 0
        %775 = vmatpush1.bf16.msra.mxu0 0
        %776 = vmatprep.subr.bf16.mxu0 %v507
        %777 = vmatpush1.bf16.msra.mxu0 %v506
        %778 = vmatprep.subr.bf16.mxu0 0
        %779 = vmatpush2.bf16.msra.mxu0 0
        %780 = vmatprep.subr.bf16.mxu0 0
        %781 = vmatpush2.bf16.msra.mxu0 0
        %782 = vmatprep.subr.bf16.mxu0 0
        %783 = vmatpush2.bf16.msra.mxu0 0
        %784 = vmatprep.subr.bf16.mxu0 0
        %785 = vmatpush2.bf16.msra.mxu0 0
        %786 = vmatprep.subr.bf16.mxu0 0
        %787 = vmatpush2.bf16.msra.mxu0 0
        %788 = vmatprep.subr.bf16.mxu0 0
        %789 = vmatpush2.bf16.msra.mxu0 0
        %790 = vmatprep.subr.bf16.mxu0 0
        %791 = vmatpush2.bf16.msra.mxu0 0
        %792 = vmatprep.subr.bf16.mxu0 0
        %793 = vmatpush2.bf16.msra.mxu0 0
        %794 = vmatprep.mubr.bf16.mxu0 0
        %795 = vmatmul.mubr.bf16.gmra.mxu0 %v742
        %v796 = vpop.f32.mrf.mxu0
        %v797 = vadd.f32 0.0, %v796
        %v798 = vpop.f32.mrf.mxu0
        %v799 = vadd.f32 0.0, %v798
        %v800 = vpop.f32.mrf.mxu0
        %v801 = vadd.f32 0.0, %v800
        %v802 = vpop.f32.mrf.mxu0
        %v803 = vadd.f32 0.0, %v802
        %804 = vmatprep.mubr.bf16.mxu0 0
        %805 = vmatmul.mubr.bf16.gmra.mxu0 %v745
        %v806 = vpop.f32.mrf.mxu0
        %v807 = vadd.f32 0.0, %v806
        %v808 = vpop.f32.mrf.mxu0
        %v809 = vadd.f32 0.0, %v808
        %v810 = vpop.f32.mrf.mxu0
        %v811 = vadd.f32 0.0, %v810
        %v812 = vpop.f32.mrf.mxu0
        %v813 = vadd.f32 0.0, %v812
        %814 = vmatprep.mubr.bf16.mxu0 0
        %815 = vmatmul.mubr.bf16.gmra.mxu0 %v748
        %v816 = vpop.f32.mrf.mxu0
        %v817 = vadd.f32 0.0, %v816
        %v818 = vpop.f32.mrf.mxu0
        %v819 = vadd.f32 0.0, %v818
        %v820 = vpop.f32.mrf.mxu0
        %v821 = vadd.f32 0.0, %v820
        %v822 = vpop.f32.mrf.mxu0
        %v823 = vadd.f32 0.0, %v822
        %824 = vmatprep.mubr.bf16.mxu0 0
        %825 = vmatmul.mubr.bf16.gmra.mxu0 %v751
        %v826 = vpop.f32.mrf.mxu0
        %v827 = vadd.f32 0.0, %v826
        %v828 = vpop.f32.mrf.mxu0
        %v829 = vadd.f32 0.0, %v828
        %v830 = vpop.f32.mrf.mxu0
        %v831 = vadd.f32 0.0, %v830
        %v832 = vpop.f32.mrf.mxu0
        %v833 = vadd.f32 0.0, %v832
        %834 = vmatprep.mubr.bf16.mxu0 0
        %835 = vmatmul.mubr.bf16.gmra.mxu0 %v754
        %v836 = vpop.f32.mrf.mxu0
        %v837 = vadd.f32 0.0, %v836
        %v838 = vpop.f32.mrf.mxu0
        %v839 = vadd.f32 0.0, %v838
        %v840 = vpop.f32.mrf.mxu0
        %v841 = vadd.f32 0.0, %v840
        %v842 = vpop.f32.mrf.mxu0
        %v843 = vadd.f32 0.0, %v842
        %844 = vmatprep.mubr.bf16.mxu0 0
        %845 = vmatmul.mubr.bf16.gmra.mxu0 %v757
        %v846 = vpop.f32.mrf.mxu0
        %v847 = vadd.f32 0.0, %v846
        %v848 = vpop.f32.mrf.mxu0
        %v849 = vadd.f32 0.0, %v848
        %v850 = vpop.f32.mrf.mxu0
        %v851 = vadd.f32 0.0, %v850
        %v852 = vpop.f32.mrf.mxu0
        %v853 = vadd.f32 0.0, %v852
        %854 = vmatprep.mubr.bf16.mxu0 0
        %855 = vmatmul.mubr.bf16.gmra.mxu0 %v760
        %v856 = vpop.f32.mrf.mxu0
        %v857 = vadd.f32 0.0, %v856
        %v858 = vpop.f32.mrf.mxu0
        %v859 = vadd.f32 0.0, %v858
        %v860 = vpop.f32.mrf.mxu0
        %v861 = vadd.f32 0.0, %v860
        %v862 = vpop.f32.mrf.mxu0
        %v863 = vadd.f32 0.0, %v862
        %864 = vdwg.mxu0
        %s865 = scalar_lea.vmem %s269, 8 [#allocation2]
        %v866 = vld [vmem:[%s865] sm:$0x3]
        %v867 = vld [vmem:[%s865 + $0x2] sm:$0x3]
        %v868 = vunpack.c.l.u8.bf16 %v866
        %v869 = vunpack.c.l.u8.bf16 %v867
        %v872 = vunpack.c.l.b16 %v868
        %v873 = vunpack.c.l.b16 %v869
        %v874 = vpack.c.b16 %v873, %v872
        %876 = vmatprep.subr.bf16.mxu0 0
        %877 = vmatpush1.bf16.msra.mxu0 0
        %878 = vmatprep.subr.bf16.mxu0 0
        %879 = vmatpush1.bf16.msra.mxu0 0
        %880 = vmatprep.subr.bf16.mxu0 0
        %881 = vmatpush1.bf16.msra.mxu0 0
        %882 = vmatprep.subr.bf16.mxu0 0
        %883 = vmatpush1.bf16.msra.mxu0 0
        %884 = vmatprep.subr.bf16.mxu0 0
        %885 = vmatpush1.bf16.msra.mxu0 0
        %886 = vmatprep.subr.bf16.mxu0 0
        %887 = vmatpush1.bf16.msra.mxu0 0
        %888 = vmatprep.subr.bf16.mxu0 0
        %889 = vmatpush1.bf16.msra.mxu0 0
        %890 = vmatprep.subr.bf16.mxu0 0
        %891 = vmatpush1.bf16.msra.mxu0 %v874
        %892 = vmatprep.subr.bf16.mxu0 0
        %893 = vmatpush2.bf16.msra.mxu0 0
        %894 = vmatprep.subr.bf16.mxu0 0
        %895 = vmatpush2.bf16.msra.mxu0 0
        %896 = vmatprep.subr.bf16.mxu0 0
        %897 = vmatpush2.bf16.msra.mxu0 0
        %898 = vmatprep.subr.bf16.mxu0 0
        %899 = vmatpush2.bf16.msra.mxu0 0
        %900 = vmatprep.subr.bf16.mxu0 0
        %901 = vmatpush2.bf16.msra.mxu0 0
        %902 = vmatprep.subr.bf16.mxu0 0
        %903 = vmatpush2.bf16.msra.mxu0 0
        %904 = vmatprep.subr.bf16.mxu0 0
        %905 = vmatpush2.bf16.msra.mxu0 0
        %906 = vmatprep.subr.bf16.mxu0 0
        %907 = vmatpush2.bf16.msra.mxu0 0
        %908 = vmatprep.mubr.bf16.mxu0 0
        %909 = vmatmul.mubr.bf16.gmra.mxu0 %v384
        %v910 = vpop.f32.mrf.mxu0
        %v911 = vadd.f32 0.0, %v910
        %v912 = vpop.f32.mrf.mxu0
        %v913 = vpop.f32.mrf.mxu0
        %v914 = vadd.f32 0.0, %v913
        %v915 = vpop.f32.mrf.mxu0
        %916 = vmatprep.mubr.bf16.mxu0 0
        %917 = vmatmul.mubr.bf16.gmra.mxu0 %v387
        %v918 = vpop.f32.mrf.mxu0
        %v919 = vadd.f32 0.0, %v918
        %v920 = vpop.f32.mrf.mxu0
        %v921 = vpop.f32.mrf.mxu0
        %v922 = vadd.f32 0.0, %v921
        %v923 = vpop.f32.mrf.mxu0
        %924 = vmatprep.mubr.bf16.mxu0 0
        %925 = vmatmul.mubr.bf16.gmra.mxu0 %v390
        %v926 = vpop.f32.mrf.mxu0
        %v927 = vadd.f32 0.0, %v926
        %v928 = vpop.f32.mrf.mxu0
        %v929 = vpop.f32.mrf.mxu0
        %v930 = vadd.f32 0.0, %v929
        %v931 = vpop.f32.mrf.mxu0
        %932 = vmatprep.mubr.bf16.mxu0 0
        %933 = vmatmul.mubr.bf16.gmra.mxu0 %v393
        %v934 = vpop.f32.mrf.mxu0
        %v935 = vadd.f32 0.0, %v934
        %v936 = vpop.f32.mrf.mxu0
        %v937 = vpop.f32.mrf.mxu0
        %v938 = vadd.f32 0.0, %v937
        %v939 = vpop.f32.mrf.mxu0
        %940 = vmatprep.mubr.bf16.mxu0 0
        %941 = vmatmul.mubr.bf16.gmra.mxu0 %v396
        %v942 = vpop.f32.mrf.mxu0
        %v943 = vadd.f32 0.0, %v942
        %v944 = vpop.f32.mrf.mxu0
        %v945 = vpop.f32.mrf.mxu0
        %v946 = vadd.f32 0.0, %v945
        %v947 = vpop.f32.mrf.mxu0
        %948 = vmatprep.mubr.bf16.mxu0 0
        %949 = vmatmul.mubr.bf16.gmra.mxu0 %v399
        %v950 = vpop.f32.mrf.mxu0
        %v951 = vadd.f32 0.0, %v950
        %v952 = vpop.f32.mrf.mxu0
        %v953 = vpop.f32.mrf.mxu0
        %v954 = vadd.f32 0.0, %v953
        %v955 = vpop.f32.mrf.mxu0
        %956 = vmatprep.mubr.bf16.mxu0 0
        %957 = vmatmul.mubr.bf16.gmra.mxu0 %v402
        %v958 = vpop.f32.mrf.mxu0
        %v959 = vadd.f32 0.0, %v958
        %v960 = vpop.f32.mrf.mxu0
        %v961 = vpop.f32.mrf.mxu0
        %v962 = vadd.f32 0.0, %v961
        %v963 = vpop.f32.mrf.mxu0
        %964 = vdwg.mxu0
        %v965 = vpack.c.bf16 %v914, %v911
        %v966 = vpack.c.bf16 %v922, %v919
        %v967 = vpack.c.bf16 %v930, %v927
        %v968 = vpack.c.bf16 %v938, %v935
        %v969 = vpack.c.bf16 %v946, %v943
        %v970 = vpack.c.bf16 %v954, %v951
        %v971 = vpack.c.bf16 %v962, %v959
        %v973 = vsel %vm382, %v965, 0
        %v976 = vsel %vm382, %v966, 0
        %v979 = vsel %vm382, %v967, 0
        %v982 = vsel %vm382, %v968, 0
        %v985 = vsel %vm382, %v969, 0
        %v988 = vsel %vm382, %v970, 0
        %v991 = vsel %vm382, %v971, 0
        %993 = vmatprep.subr.bf16.mxu0 0
        %994 = vmatpush1.bf16.msra.mxu0 0
        %995 = vmatprep.subr.bf16.mxu0 0
        %996 = vmatpush1.bf16.msra.mxu0 0
        %997 = vmatprep.subr.bf16.mxu0 0
        %998 = vmatpush1.bf16.msra.mxu0 0
        %999 = vmatprep.subr.bf16.mxu0 0
        %1000 = vmatpush1.bf16.msra.mxu0 0
        %1001 = vmatprep.subr.bf16.mxu0 0
        %1002 = vmatpush1.bf16.msra.mxu0 0
        %1003 = vmatprep.subr.bf16.mxu0 0
        %1004 = vmatpush1.bf16.msra.mxu0 0
        %1005 = vmatprep.subr.bf16.mxu0 0
        %1006 = vmatpush1.bf16.msra.mxu0 0
        %1007 = vmatprep.subr.bf16.mxu0 %v507
        %1008 = vmatpush1.bf16.msra.mxu0 %v506
        %1009 = vmatprep.subr.bf16.mxu0 0
        %1010 = vmatpush2.bf16.msra.mxu0 0
        %1011 = vmatprep.subr.bf16.mxu0 0
        %1012 = vmatpush2.bf16.msra.mxu0 0
        %1013 = vmatprep.subr.bf16.mxu0 0
        %1014 = vmatpush2.bf16.msra.mxu0 0
        %1015 = vmatprep.subr.bf16.mxu0 0
        %1016 = vmatpush2.bf16.msra.mxu0 0
        %1017 = vmatprep.subr.bf16.mxu0 0
        %1018 = vmatpush2.bf16.msra.mxu0 0
        %1019 = vmatprep.subr.bf16.mxu0 0
        %1020 = vmatpush2.bf16.msra.mxu0 0
        %1021 = vmatprep.subr.bf16.mxu0 0
        %1022 = vmatpush2.bf16.msra.mxu0 0
        %1023 = vmatprep.subr.bf16.mxu0 0
        %1024 = vmatpush2.bf16.msra.mxu0 0
        %1025 = vmatprep.mubr.bf16.mxu0 0
        %1026 = vmatmul.mubr.bf16.gmra.mxu0 %v973
        %v1027 = vpop.f32.mrf.mxu0
        %v1028 = vadd.f32 0.0, %v1027
        %v1029 = vpop.f32.mrf.mxu0
        %v1030 = vadd.f32 0.0, %v1029
        %v1031 = vpop.f32.mrf.mxu0
        %v1032 = vadd.f32 0.0, %v1031
        %v1033 = vpop.f32.mrf.mxu0
        %v1034 = vadd.f32 0.0, %v1033
        %1035 = vmatprep.mubr.bf16.mxu0 0
        %1036 = vmatmul.mubr.bf16.gmra.mxu0 %v976
        %v1037 = vpop.f32.mrf.mxu0
        %v1038 = vadd.f32 0.0, %v1037
        %v1039 = vpop.f32.mrf.mxu0
        %v1040 = vadd.f32 0.0, %v1039
        %v1041 = vpop.f32.mrf.mxu0
        %v1042 = vadd.f32 0.0, %v1041
        %v1043 = vpop.f32.mrf.mxu0
        %v1044 = vadd.f32 0.0, %v1043
        %1045 = vmatprep.mubr.bf16.mxu0 0
        %1046 = vmatmul.mubr.bf16.gmra.mxu0 %v979
        %v1047 = vpop.f32.mrf.mxu0
        %v1048 = vadd.f32 0.0, %v1047
        %v1049 = vpop.f32.mrf.mxu0
        %v1050 = vadd.f32 0.0, %v1049
        %v1051 = vpop.f32.mrf.mxu0
        %v1052 = vadd.f32 0.0, %v1051
        %v1053 = vpop.f32.mrf.mxu0
        %v1054 = vadd.f32 0.0, %v1053
        %1055 = vmatprep.mubr.bf16.mxu0 0
        %1056 = vmatmul.mubr.bf16.gmra.mxu0 %v982
        %v1057 = vpop.f32.mrf.mxu0
        %v1058 = vadd.f32 0.0, %v1057
        %v1059 = vpop.f32.mrf.mxu0
        %v1060 = vadd.f32 0.0, %v1059
        %v1061 = vpop.f32.mrf.mxu0
        %v1062 = vadd.f32 0.0, %v1061
        %v1063 = vpop.f32.mrf.mxu0
        %v1064 = vadd.f32 0.0, %v1063
        %1065 = vmatprep.mubr.bf16.mxu0 0
        %1066 = vmatmul.mubr.bf16.gmra.mxu0 %v985
        %v1067 = vpop.f32.mrf.mxu0
        %v1068 = vadd.f32 0.0, %v1067
        %v1069 = vpop.f32.mrf.mxu0
        %v1070 = vadd.f32 0.0, %v1069
        %v1071 = vpop.f32.mrf.mxu0
        %v1072 = vadd.f32 0.0, %v1071
        %v1073 = vpop.f32.mrf.mxu0
        %v1074 = vadd.f32 0.0, %v1073
        %1075 = vmatprep.mubr.bf16.mxu0 0
        %1076 = vmatmul.mubr.bf16.gmra.mxu0 %v988
        %v1077 = vpop.f32.mrf.mxu0
        %v1078 = vadd.f32 0.0, %v1077
        %v1079 = vpop.f32.mrf.mxu0
        %v1080 = vadd.f32 0.0, %v1079
        %v1081 = vpop.f32.mrf.mxu0
        %v1082 = vadd.f32 0.0, %v1081
        %v1083 = vpop.f32.mrf.mxu0
        %v1084 = vadd.f32 0.0, %v1083
        %1085 = vmatprep.mubr.bf16.mxu0 0
        %1086 = vmatmul.mubr.bf16.gmra.mxu0 %v991
        %v1087 = vpop.f32.mrf.mxu0
        %v1088 = vadd.f32 0.0, %v1087
        %v1089 = vpop.f32.mrf.mxu0
        %v1090 = vadd.f32 0.0, %v1089
        %v1091 = vpop.f32.mrf.mxu0
        %v1092 = vadd.f32 0.0, %v1091
        %v1093 = vpop.f32.mrf.mxu0
        %v1094 = vadd.f32 0.0, %v1093
        %1095 = vdwg.mxu0
        %v1096 = vld [vmem:[#allocation7] sm:$0x3f]
        %v1098 = vlaneseq
        %v1099 = vshrl.u32 %v1098, 7
        %v1100 = vsub.s32 0, %v1099
        %v1101 = vrot.slane %v1096, %v1100
        %v1102 = vlaneseq
        %v1103 = vshrl.u32 %v1102, 7
        %v1104 = vsub.s32 1, %v1103
        %v1105 = vrot.slane %v1096, %v1104
        %v1106 = vlaneseq
        %v1107 = vshrl.u32 %v1106, 7
        %v1108 = vsub.s32 2, %v1107
        %v1109 = vrot.slane %v1096, %v1108
        %v1110 = vlaneseq
        %v1111 = vshrl.u32 %v1110, 7
        %v1112 = vsub.s32 3, %v1111
        %v1113 = vrot.slane %v1096, %v1112
        %v1114 = vlaneseq
        %v1115 = vshrl.u32 %v1114, 7
        %v1116 = vsub.s32 4, %v1115
        %v1117 = vrot.slane %v1096, %v1116
        %v1118 = vlaneseq
        %v1119 = vshrl.u32 %v1118, 7
        %v1120 = vsub.s32 5, %v1119
        %v1121 = vrot.slane %v1096, %v1120
        %v1128 = vmul.f32 %v566, %v1101
        %v1129 = vmul.f32 %v568, %v1105
        %v1130 = vmul.f32 %v797, %v1109
        %v1131 = vmul.f32 %v799, %v1113
        %v1132 = vmul.f32 %v1028, %v1117
        %v1133 = vmul.f32 %v1030, %v1121
        %v1134 = vmul.f32 %v570, %v1101
        %v1135 = vmul.f32 %v572, %v1105
        %v1136 = vmul.f32 %v801, %v1109
        %v1137 = vmul.f32 %v803, %v1113
        %v1138 = vmul.f32 %v1032, %v1117
        %v1139 = vmul.f32 %v1034, %v1121
        %v1140 = vmul.f32 %v576, %v1101
        %v1141 = vmul.f32 %v578, %v1105
        %v1142 = vmul.f32 %v807, %v1109
        %v1143 = vmul.f32 %v809, %v1113
        %v1144 = vmul.f32 %v1038, %v1117
        %v1145 = vmul.f32 %v1040, %v1121
        %v1146 = vmul.f32 %v580, %v1101
        %v1147 = vmul.f32 %v582, %v1105
        %v1148 = vmul.f32 %v811, %v1109
        %v1149 = vmul.f32 %v813, %v1113
        %v1150 = vmul.f32 %v1042, %v1117
        %v1151 = vmul.f32 %v1044, %v1121
        %v1152 = vmul.f32 %v586, %v1101
        %v1153 = vmul.f32 %v588, %v1105
        %v1154 = vmul.f32 %v817, %v1109
        %v1155 = vmul.f32 %v819, %v1113
        %v1156 = vmul.f32 %v1048, %v1117
        %v1157 = vmul.f32 %v1050, %v1121
        %v1158 = vmul.f32 %v590, %v1101
        %v1159 = vmul.f32 %v592, %v1105
        %v1160 = vmul.f32 %v821, %v1109
        %v1161 = vmul.f32 %v823, %v1113
        %v1162 = vmul.f32 %v1052, %v1117
        %v1163 = vmul.f32 %v1054, %v1121
        %v1164 = vmul.f32 %v596, %v1101
        %v1165 = vmul.f32 %v598, %v1105
        %v1166 = vmul.f32 %v827, %v1109
        %v1167 = vmul.f32 %v829, %v1113
        %v1168 = vmul.f32 %v1058, %v1117
        %v1169 = vmul.f32 %v1060, %v1121
        %v1170 = vmul.f32 %v600, %v1101
        %v1171 = vmul.f32 %v602, %v1105
        %v1172 = vmul.f32 %v831, %v1109
        %v1173 = vmul.f32 %v833, %v1113
        %v1174 = vmul.f32 %v1062, %v1117
        %v1175 = vmul.f32 %v1064, %v1121
        %v1176 = vmul.f32 %v606, %v1101
        %v1177 = vmul.f32 %v608, %v1105
        %v1178 = vmul.f32 %v837, %v1109
        %v1179 = vmul.f32 %v839, %v1113
        %v1180 = vmul.f32 %v1068, %v1117
        %v1181 = vmul.f32 %v1070, %v1121
        %v1182 = vmul.f32 %v610, %v1101
        %v1183 = vmul.f32 %v612, %v1105
        %v1184 = vmul.f32 %v841, %v1109
        %v1185 = vmul.f32 %v843, %v1113
        %v1186 = vmul.f32 %v1072, %v1117
        %v1187 = vmul.f32 %v1074, %v1121
        %v1188 = vmul.f32 %v616, %v1101
        %v1189 = vmul.f32 %v618, %v1105
        %v1190 = vmul.f32 %v847, %v1109
        %v1191 = vmul.f32 %v849, %v1113
        %v1192 = vmul.f32 %v1078, %v1117
        %v1193 = vmul.f32 %v1080, %v1121
        %v1194 = vmul.f32 %v620, %v1101
        %v1195 = vmul.f32 %v622, %v1105
        %v1196 = vmul.f32 %v851, %v1109
        %v1197 = vmul.f32 %v853, %v1113
        %v1198 = vmul.f32 %v1082, %v1117
        %v1199 = vmul.f32 %v1084, %v1121
        %v1200 = vmul.f32 %v626, %v1101
        %v1201 = vmul.f32 %v628, %v1105
        %v1202 = vmul.f32 %v857, %v1109
        %v1203 = vmul.f32 %v859, %v1113
        %v1204 = vmul.f32 %v1088, %v1117
        %v1205 = vmul.f32 %v1090, %v1121
        %v1206 = vmul.f32 %v630, %v1101
        %v1207 = vmul.f32 %v632, %v1105
        %v1208 = vmul.f32 %v861, %v1109
        %v1209 = vmul.f32 %v863, %v1113
        %v1210 = vmul.f32 %v1092, %v1117
        %v1211 = vmul.f32 %v1094, %v1121
        %v1212 = vld [vmem:[#allocation8] sm:$0x3f]
        %v1214 = vlaneseq
        %v1215 = vshrl.u32 %v1214, 7
        %v1216 = vsub.s32 0, %v1215
        %v1217 = vrot.slane %v1212, %v1216
        %v1218 = vlaneseq
        %v1219 = vshrl.u32 %v1218, 7
        %v1220 = vsub.s32 1, %v1219
        %v1221 = vrot.slane %v1212, %v1220
        %v1222 = vlaneseq
        %v1223 = vshrl.u32 %v1222, 7
        %v1224 = vsub.s32 2, %v1223
        %v1225 = vrot.slane %v1212, %v1224
        %v1226 = vlaneseq
        %v1227 = vshrl.u32 %v1226, 7
        %v1228 = vsub.s32 3, %v1227
        %v1229 = vrot.slane %v1212, %v1228
        %v1230 = vlaneseq
        %v1231 = vshrl.u32 %v1230, 7
        %v1232 = vsub.s32 4, %v1231
        %v1233 = vrot.slane %v1212, %v1232
        %v1234 = vlaneseq
        %v1235 = vshrl.u32 %v1234, 7
        %v1236 = vsub.s32 5, %v1235
        %v1237 = vrot.slane %v1212, %v1236
        %v1244 = vsub.f32 %v1128, %v1217
        %v1245 = vsub.f32 %v1129, %v1221
        %v1246 = vsub.f32 %v1130, %v1225
        %v1247 = vsub.f32 %v1131, %v1229
        %v1248 = vsub.f32 %v1132, %v1233
        %v1249 = vsub.f32 %v1133, %v1237
        %v1250 = vsub.f32 %v1134, %v1217
        %v1251 = vsub.f32 %v1135, %v1221
        %v1252 = vsub.f32 %v1136, %v1225
        %v1253 = vsub.f32 %v1137, %v1229
        %v1254 = vsub.f32 %v1138, %v1233
        %v1255 = vsub.f32 %v1139, %v1237
        %v1256 = vsub.f32 %v1140, %v1217
        %v1257 = vsub.f32 %v1141, %v1221
        %v1258 = vsub.f32 %v1142, %v1225
        %v1259 = vsub.f32 %v1143, %v1229
        %v1260 = vsub.f32 %v1144, %v1233
        %v1261 = vsub.f32 %v1145, %v1237
        %v1262 = vsub.f32 %v1146, %v1217
        %v1263 = vsub.f32 %v1147, %v1221
        %v1264 = vsub.f32 %v1148, %v1225
        %v1265 = vsub.f32 %v1149, %v1229
        %v1266 = vsub.f32 %v1150, %v1233
        %v1267 = vsub.f32 %v1151, %v1237
        %v1268 = vsub.f32 %v1152, %v1217
        %v1269 = vsub.f32 %v1153, %v1221
        %v1270 = vsub.f32 %v1154, %v1225
        %v1271 = vsub.f32 %v1155, %v1229
        %v1272 = vsub.f32 %v1156, %v1233
        %v1273 = vsub.f32 %v1157, %v1237
        %v1274 = vsub.f32 %v1158, %v1217
        %v1275 = vsub.f32 %v1159, %v1221
        %v1276 = vsub.f32 %v1160, %v1225
        %v1277 = vsub.f32 %v1161, %v1229
        %v1278 = vsub.f32 %v1162, %v1233
        %v1279 = vsub.f32 %v1163, %v1237
        %v1280 = vsub.f32 %v1164, %v1217
        %v1281 = vsub.f32 %v1165, %v1221
        %v1282 = vsub.f32 %v1166, %v1225
        %v1283 = vsub.f32 %v1167, %v1229
        %v1284 = vsub.f32 %v1168, %v1233
        %v1285 = vsub.f32 %v1169, %v1237
        %v1286 = vsub.f32 %v1170, %v1217
        %v1287 = vsub.f32 %v1171, %v1221
        %v1288 = vsub.f32 %v1172, %v1225
        %v1289 = vsub.f32 %v1173, %v1229
        %v1290 = vsub.f32 %v1174, %v1233
        %v1291 = vsub.f32 %v1175, %v1237
        %v1292 = vsub.f32 %v1176, %v1217
        %v1293 = vsub.f32 %v1177, %v1221
        %v1294 = vsub.f32 %v1178, %v1225
        %v1295 = vsub.f32 %v1179, %v1229
        %v1296 = vsub.f32 %v1180, %v1233
        %v1297 = vsub.f32 %v1181, %v1237
        %v1298 = vsub.f32 %v1182, %v1217
        %v1299 = vsub.f32 %v1183, %v1221
        %v1300 = vsub.f32 %v1184, %v1225
        %v1301 = vsub.f32 %v1185, %v1229
        %v1302 = vsub.f32 %v1186, %v1233
        %v1303 = vsub.f32 %v1187, %v1237
        %v1304 = vsub.f32 %v1188, %v1217
        %v1305 = vsub.f32 %v1189, %v1221
        %v1306 = vsub.f32 %v1190, %v1225
        %v1307 = vsub.f32 %v1191, %v1229
        %v1308 = vsub.f32 %v1192, %v1233
        %v1309 = vsub.f32 %v1193, %v1237
        %v1310 = vsub.f32 %v1194, %v1217
        %v1311 = vsub.f32 %v1195, %v1221
        %v1312 = vsub.f32 %v1196, %v1225
        %v1313 = vsub.f32 %v1197, %v1229
        %v1314 = vsub.f32 %v1198, %v1233
        %v1315 = vsub.f32 %v1199, %v1237
        %v1316 = vsub.f32 %v1200, %v1217
        %v1317 = vsub.f32 %v1201, %v1221
        %v1318 = vsub.f32 %v1202, %v1225
        %v1319 = vsub.f32 %v1203, %v1229
        %v1320 = vsub.f32 %v1204, %v1233
        %v1321 = vsub.f32 %v1205, %v1237
        %v1322 = vsub.f32 %v1206, %v1217
        %v1323 = vsub.f32 %v1207, %v1221
        %v1324 = vsub.f32 %v1208, %v1225
        %v1325 = vsub.f32 %v1209, %v1229
        %v1326 = vsub.f32 %v1210, %v1233
        %v1327 = vsub.f32 %v1211, %v1237
        %1328 = vst [vmem:[%s312] sm:$0xff] %v1244
        %1329 = vst [vmem:[%s312 + $0x8] sm:$0xff] %v1245
        %1330 = vst [vmem:[%s312 + $0x10] sm:$0xff] %v1246
        %1331 = vst [vmem:[%s312 + $0x18] sm:$0xff] %v1247
        %1332 = vst [vmem:[%s312 + $0x20] sm:$0xff] %v1248
        %1333 = vst [vmem:[%s312 + $0x28] sm:$0xff] %v1249
        %1334 = vst [vmem:[%s312 + $0x30] sm:$0xff] %v1250
        %1335 = vst [vmem:[%s312 + $0x38] sm:$0xff] %v1251
        %1336 = vst [vmem:[%s312 + $0x40] sm:$0xff] %v1252
        %1337 = vst [vmem:[%s312 + $0x48] sm:$0xff] %v1253
        %1338 = vst [vmem:[%s312 + $0x50] sm:$0xff] %v1254
        %1339 = vst [vmem:[%s312 + $0x58] sm:$0xff] %v1255
        %1340 = vst [vmem:[%s312 + $0x60] sm:$0xff] %v1256
        %1341 = vst [vmem:[%s312 + $0x68] sm:$0xff] %v1257
        %1342 = vst [vmem:[%s312 + $0x70] sm:$0xff] %v1258
        %1343 = vst [vmem:[%s312 + $0x78] sm:$0xff] %v1259
        %1344 = vst [vmem:[%s312 + $0x80] sm:$0xff] %v1260
        %1345 = vst [vmem:[%s312 + $0x88] sm:$0xff] %v1261
        %1346 = vst [vmem:[%s312 + $0x90] sm:$0xff] %v1262
        %1347 = vst [vmem:[%s312 + $0x98] sm:$0xff] %v1263
        %1348 = vst [vmem:[%s312 + $0xa0] sm:$0xff] %v1264
        %1349 = vst [vmem:[%s312 + $0xa8] sm:$0xff] %v1265
        %1350 = vst [vmem:[%s312 + $0xb0] sm:$0xff] %v1266
        %1351 = vst [vmem:[%s312 + $0xb8] sm:$0xff] %v1267
        %1352 = vst [vmem:[%s312 + $0xc0] sm:$0xff] %v1268
        %1353 = vst [vmem:[%s312 + $0xc8] sm:$0xff] %v1269
        %1354 = vst [vmem:[%s312 + $0xd0] sm:$0xff] %v1270
        %1355 = vst [vmem:[%s312 + $0xd8] sm:$0xff] %v1271
        %1356 = vst [vmem:[%s312 + $0xe0] sm:$0xff] %v1272
        %1357 = vst [vmem:[%s312 + $0xe8] sm:$0xff] %v1273
        %1358 = vst [vmem:[%s312 + $0xf0] sm:$0xff] %v1274
        %1359 = vst [vmem:[%s312 + $0xf8] sm:$0xff] %v1275
        %1360 = vst [vmem:[%s312 + $0x100] sm:$0xff] %v1276
        %1361 = vst [vmem:[%s312 + $0x108] sm:$0xff] %v1277
        %1362 = vst [vmem:[%s312 + $0x110] sm:$0xff] %v1278
        %1363 = vst [vmem:[%s312 + $0x118] sm:$0xff] %v1279
        %1364 = vst [vmem:[%s312 + $0x120] sm:$0xff] %v1280
        %1365 = vst [vmem:[%s312 + $0x128] sm:$0xff] %v1281
        %1366 = vst [vmem:[%s312 + $0x130] sm:$0xff] %v1282
        %1367 = vst [vmem:[%s312 + $0x138] sm:$0xff] %v1283
        %1368 = vst [vmem:[%s312 + $0x140] sm:$0xff] %v1284
        %1369 = vst [vmem:[%s312 + $0x148] sm:$0xff] %v1285
        %1370 = vst [vmem:[%s312 + $0x150] sm:$0xff] %v1286
        %1371 = vst [vmem:[%s312 + $0x158] sm:$0xff] %v1287
        %1372 = vst [vmem:[%s312 + $0x160] sm:$0xff] %v1288
        %1373 = vst [vmem:[%s312 + $0x168] sm:$0xff] %v1289
        %1374 = vst [vmem:[%s312 + $0x170] sm:$0xff] %v1290
        %1375 = vst [vmem:[%s312 + $0x178] sm:$0xff] %v1291
        %1376 = vst [vmem:[%s312 + $0x180] sm:$0xff] %v1292
        %1377 = vst [vmem:[%s312 + $0x188] sm:$0xff] %v1293
        %1378 = vst [vmem:[%s312 + $0x190] sm:$0xff] %v1294
        %1379 = vst [vmem:[%s312 + $0x198] sm:$0xff] %v1295
        %1380 = vst [vmem:[%s312 + $0x1a0] sm:$0xff] %v1296
        %1381 = vst [vmem:[%s312 + $0x1a8] sm:$0xff] %v1297
        %1382 = vst [vmem:[%s312 + $0x1b0] sm:$0xff] %v1298
        %1383 = vst [vmem:[%s312 + $0x1b8] sm:$0xff] %v1299
        %1384 = vst [vmem:[%s312 + $0x1c0] sm:$0xff] %v1300
        %1385 = vst [vmem:[%s312 + $0x1c8] sm:$0xff] %v1301
        %1386 = vst [vmem:[%s312 + $0x1d0] sm:$0xff] %v1302
        %1387 = vst [vmem:[%s312 + $0x1d8] sm:$0xff] %v1303
        %1388 = vst [vmem:[%s312 + $0x1e0] sm:$0xff] %v1304
        %1389 = vst [vmem:[%s312 + $0x1e8] sm:$0xff] %v1305
        %1390 = vst [vmem:[%s312 + $0x1f0] sm:$0xff] %v1306
        %1391 = vst [vmem:[%s312 + $0x1f8] sm:$0xff] %v1307
        %1392 = vst [vmem:[%s312 + $0x200] sm:$0xff] %v1308
        %1393 = vst [vmem:[%s312 + $0x208] sm:$0xff] %v1309
        %1394 = vst [vmem:[%s312 + $0x210] sm:$0xff] %v1310
        %1395 = vst [vmem:[%s312 + $0x218] sm:$0xff] %v1311
        %1396 = vst [vmem:[%s312 + $0x220] sm:$0xff] %v1312
        %1397 = vst [vmem:[%s312 + $0x228] sm:$0xff] %v1313
        %1398 = vst [vmem:[%s312 + $0x230] sm:$0xff] %v1314
        %1399 = vst [vmem:[%s312 + $0x238] sm:$0xff] %v1315
        %1400 = vst [vmem:[%s312 + $0x240] sm:$0xff] %v1316
        %1401 = vst [vmem:[%s312 + $0x248] sm:$0xff] %v1317
        %1402 = vst [vmem:[%s312 + $0x250] sm:$0xff] %v1318
        %1403 = vst [vmem:[%s312 + $0x258] sm:$0xff] %v1319
        %1404 = vst [vmem:[%s312 + $0x260] sm:$0xff] %v1320
        %1405 = vst [vmem:[%s312 + $0x268] sm:$0xff] %v1321
        %1406 = vst [vmem:[%s312 + $0x270] sm:$0xff] %v1322
        %1407 = vst [vmem:[%s312 + $0x278] sm:$0xff] %v1323
        %1408 = vst [vmem:[%s312 + $0x280] sm:$0xff] %v1324
        %1409 = vst [vmem:[%s312 + $0x288] sm:$0xff] %v1325
        %1410 = vst [vmem:[%s312 + $0x290] sm:$0xff] %v1326
        %1411 = vst [vmem:[%s312 + $0x298] sm:$0xff] %v1327
        %s1412 = sand.u32 %s161, 1
        %s1413 = scalar_lea.sflag [#allocation4], %s1412
        %s1414 = sand.u32 %s161, 1
        %s1415 = smul.addr %s1414, 672
        %s1416 = scalar_lea.vmem [#allocation10], %s1415
        // Predicated region
        $region57: #{tpu_custom_call.1} parent=39 // pred_check
          %p1417 = pneg %p171
        $region58: #{tpu_custom_call.1} parent=39 // pred_check_branch
          %1419 = sbr.rel (%p1417) target = $region60
        $region59: #{tpu_custom_call.1} parent=39 // pred_region
          %s1420 = smul.u32 14, %s29
          %s1422 = ssub.s32 10752, 10752
          %1423 = vsyncadd %s1413, %s1422
          %s1424 = smul.addr %s1420, 6
          %s1425 = smul.addr %s28, 168
          %s1426 = sadd.s32 %s1424, %s1425
          %s1427 = smul.addr %s1426, 128
          %s1428 = scalar_lea.hbm %s5, %s1427
          %s1429 = sshll.u32 %s1416, 4
          %s1430 = int_to_ptr.vmem [resolvable:$true] %s1429
          %1435 = dma.vmem_to_hbm [thread:$0]  %s1430, 10752, %s1428, %s1413, 768, 768, 48
        $region60: #{tpu_custom_call.1} parent=39 // pred_fallthru
          _
      $region40: #{tpu_custom_call.1} parent=5 // pred_fallthru
        _
      %p1436 = scmp.le.s32.totalorder 2, %s19
      // Predicated region
      $region61: #{tpu_custom_call.1} parent=5 // pred_check
        %p1437 = pneg %p1436
      $region62: #{tpu_custom_call.1} parent=5 // pred_check_branch
        %1439 = sbr.rel (%p1437) target = $region64
      $region63: #{tpu_custom_call.1} parent=5 // pred_region
        %s1440 = ssub.s32 %s19, 2
        // Predicated region
        $region65: #{tpu_custom_call.1} parent=63 // pred_check
          %p1441 = pneg %p177
        $region66: #{tpu_custom_call.1} parent=63 // pred_check_branch
          %1443 = sbr.rel (%p1441) target = $region68
        $region67: #{tpu_custom_call.1} parent=63 // pred_region
          %s1444 = sand.u32 %s162, 1
          %s1445 = scalar_lea.sflag [#allocation4], %s1444
          %s1446 = sand.u32 %s162, 1
          %s1447 = smul.addr %s1446, 672
          %s1448 = scalar_lea.vmem [#allocation10], %s1447
          %1449 = dma.done %s1445, 10752
        $region68: #{tpu_custom_call.1} parent=63 // pred_fallthru
          _
      $region64: #{tpu_custom_call.1} parent=5 // pred_fallthru
        _
    $region6: #{tpu_custom_call.1} parent=1 // loop_footer
      %s23 = sadd.s32 1, %s19
    $region7: #{tpu_custom_call.1} parent=1 // loop_footer_branch
      %18 = sbr.rel target = $region3
    $region8: #{tpu_custom_call.1} parent=1 // loop_exit
      _
    %1450 = vsyncpa [#allocation3], 1
    %s1451 = scalar_lea.sflag [#allocation3], 1
    %1452 = vsyncpa %s1451, 1
    %1453 = vsyncpa [#allocation6], 1
    %1454 = vsyncpa [#allocation9], 1
    %1455 = vsyncpa [#allocation4], 1
    %s1456 = scalar_lea.sflag [#allocation4], 1
    %1457 = vsyncpa %s1456, 1

</llo_original>
